<compile_context>
chip_gen: v7x
topology: tpu7x:2x2x1
jax: 0.10.0
libtpu: 0.0.40
codegen_flags: <defaults>
</compile_context>

<pallas_src>
import functools
import math

import jax
import jax.numpy as jnp
from jax.experimental import pallas as pl
from jax.experimental.pallas import tpu as pltpu


def _layer_norm(v, w, b, eps=1e-6):
    mean = jnp.mean(v, axis=-1, keepdims=True)
    var = jnp.mean((v - mean) ** 2, axis=-1, keepdims=True)
    return (v - mean) * jax.lax.rsqrt(var + eps) * w + b


def _rms_norm(v, g_eff):
    # Matches F.normalize(v, dim=-1) * g * sqrt(dim); sqrt(dim) (and, for q, the
    # 1/sqrt(dim_head) attention scale) is pre-folded into g_eff in the wrapper.
    # rsqrt goes to the otherwise-idle EUP slot.
    ss = jnp.sum(v * v, axis=-1, keepdims=True)
    return v * jax.lax.rsqrt(jnp.maximum(ss, 1e-24)) * g_eff


def decoder_block_kernel(
    x_ref,
    ln1_w_ref, ln1_b_ref,
    w_qkv_ref, b_qkv_ref,
    g_q_ref, g_k_ref,
    w_out_ref, b_out_ref, g_out_ref,
    ln2_w_ref, ln2_b_ref,
    w_ff1_ref, b_ff1_ref,
    w_ff2_ref, b_ff2_ref,
    o_ref,
    *, num_head, dim_head,
):
    f32 = jnp.float32
    bf16 = jnp.bfloat16

    x = x_ref[0]                       # (S, D) f32
    hidden = num_head * dim_head

    # ---------------- attention branch ----------------
    h1 = _layer_norm(x, ln1_w_ref[0], ln1_b_ref[0])
    qkv = jnp.dot(h1.astype(bf16), w_qkv_ref[...],
                  preferred_element_type=f32) + b_qkv_ref[0]

    # RMSNorm over the full hidden dim (the rearrange b h l d -> b l (h d) is a
    # no-op on the flat (S, hidden) layout); attention scale folded into g_q.
    q = _rms_norm(qkv[:, 0 * hidden:1 * hidden], g_q_ref[0])
    k = _rms_norm(qkv[:, 1 * hidden:2 * hidden], g_k_ref[0])
    v = qkv[:, 2 * hidden:3 * hidden]

    # Head-major (H, S, dh) built once; attention is two batched contractions
    # (no per-head matmul loop, no kh.T transposes, no lane-offset concatenate
    # of score matrices).
    def to_heads(t):
        return jnp.stack(
            [t[:, h * dim_head:(h + 1) * dim_head] for h in range(num_head)],
            axis=0)

    qh = to_heads(q).astype(bf16)      # (H, S, dh)
    kh = to_heads(k).astype(bf16)
    vh = to_heads(v).astype(bf16)

    # TODO(synk): for large S, replace the full (H, S, S) score tensor with a
    # KV-tiled online-softmax (flash) loop to bound VMEM.
    s = jnp.einsum("hqd,hkd->hqk", qh, kh, preferred_element_type=f32)
    s = s - jnp.max(s, axis=-1, keepdims=True)
    p = jnp.exp(s)
    p = p * pl.reciprocal(jnp.sum(p, axis=-1, keepdims=True), approx=True)
    o_heads = jnp.einsum("hqk,hkd->hqd", p.astype(bf16), vh,
                         preferred_element_type=f32)       # (H, S, dh)

    # rearrange 'b h dv l -> b l (h dv)': concat heads along the lane dim.
    attn = jnp.concatenate([o_heads[h] for h in range(num_head)], axis=-1)

    attn = jnp.dot(attn.astype(bf16), w_out_ref[...],
                   preferred_element_type=f32) + b_out_ref[0]
    attn = _rms_norm(attn, g_out_ref[0])
    x = x + attn

    # ---------------- MLP branch ----------------
    h2 = _layer_norm(x, ln2_w_ref[0], ln2_b_ref[0])
    ff = jnp.dot(h2.astype(bf16), w_ff1_ref[...],
                 preferred_element_type=f32) + b_ff1_ref[0]
    ff = ff * jax.nn.sigmoid(ff)       # SiLU in f32
    ff = jnp.dot(ff.astype(bf16), w_ff2_ref[...],
                 preferred_element_type=f32) + b_ff2_ref[0]
    # Dropout: identity in eval mode.
    x = x + ff

    o_ref[0] = x


def decoder_block(x, params, *, num_head, dim_head):
    B, S, D = x.shape
    hidden = num_head * dim_head
    dim_ff = params["w_ff1"].shape[1]
    f32, bf16 = jnp.float32, jnp.bfloat16

    # Fold constant scales into the RMSNorm gammas (removes full-tile VPU muls).
    scale = dim_head ** -0.5
    g_q = (params["rms_q_g"] * math.sqrt(hidden) * scale).astype(f32)
    g_k = (params["rms_k_g"] * math.sqrt(hidden)).astype(f32)
    g_o = (params["g_out"] * math.sqrt(D)).astype(f32)

    # bf16 weights for the MXU; biases / norm params stay f32.
    param_list = [
        params["ln1_w"], params["ln1_b"],
        params["w_qkv"].astype(bf16), params["b_qkv"],
        g_q, g_k,
        params["w_out"].astype(bf16), params["b_out"], g_o,
        params["ln2_w"], params["ln2_b"],
        params["w_ff1"].astype(bf16), params["b_ff1"],
        params["w_ff2"].astype(bf16), params["b_ff2"],
    ]

    def full_spec(arr):
        # full (untiled) block for a 2-D parameter; constant block index.
        # (Could additionally be single-buffered via pipeline_mode=pl.Buffered
        #  at very large weight sizes.)
        return pl.BlockSpec(arr.shape, lambda b: (0, 0))

    in_specs = [pl.BlockSpec((1, S, D), lambda b: (b, 0, 0))]
    in_specs += [full_spec(p) for p in param_list]

    # Explicit VMEM budget: ~2x weights (double-buffered inputs) + activation
    # blocks + intermediates + headroom, clamped to stay within v7x's VMEM.
    def _nbytes(a):
        return int(a.size) * jnp.dtype(a.dtype).itemsize

    weight_bytes = sum(_nbytes(p) for p in param_list)
    act_block = S * D * 4
    interm = S * (3 * hidden + dim_ff) * 4 + num_head * S * S * 4
    vmem_limit = 2 * weight_bytes + 4 * act_block + 4 * interm + (8 << 20)
    vmem_limit = int(min(max(vmem_limit, 16 << 20), 60 << 20))

    kernel = functools.partial(
        decoder_block_kernel, num_head=num_head, dim_head=dim_head
    )

    return pl.pallas_call(
        kernel,
        out_shape=jax.ShapeDtypeStruct((B, S, D), jnp.float32),
        grid_spec=pltpu.PrefetchScalarGridSpec(
            num_scalar_prefetch=0,
            grid=(B,),                       # B>=2 -> both v7x TensorCores busy
            in_specs=in_specs,
            out_specs=pl.BlockSpec((1, S, D), lambda b: (b, 0, 0)),
        ),
        compiler_params=pltpu.CompilerParams(
            dimension_semantics=("parallel",),
            vmem_limit_bytes=vmem_limit,
        ),
    )(x, *param_list)


def decoder_block_reference(x, params, *, num_head, dim_head):
    """Pure-JAX reference with the PyTorch module's semantics (f32 math)."""
    B, S, D = x.shape
    scale = dim_head ** -0.5

    def ln(v, w, b):
        mean = jnp.mean(v, axis=-1, keepdims=True)
        var = jnp.mean((v - mean) ** 2, axis=-1, keepdims=True)
        return (v - mean) / jnp.sqrt(var + 1e-6) * w + b

    def rms(v, g):
        n = jnp.sqrt(jnp.sum(v * v, axis=-1, keepdims=True))
        return v / jnp.maximum(n, 1e-12) * g * math.sqrt(v.shape[-1])

    h1 = ln(x, params["ln1_w"][0], params["ln1_b"][0])
    qkv = h1 @ params["w_qkv"] + params["b_qkv"][0]
    q, k, v = jnp.split(qkv, 3, axis=-1)
    q = rms(q, params["rms_q_g"][0]) * scale
    k = rms(k, params["rms_k_g"][0])
    qh = q.reshape(B, S, num_head, dim_head).transpose(0, 2, 1, 3)
    kh = k.reshape(B, S, num_head, dim_head).transpose(0, 2, 1, 3)
    vh = v.reshape(B, S, num_head, dim_head).transpose(0, 2, 1, 3)
    sim = jnp.einsum("bhld,bhnd->bhln", qh, kh)
    p = jax.nn.softmax(sim, axis=-1)
    out = jnp.einsum("bhln,bhnd->bhld", p, vh)
    out = out.transpose(0, 2, 1, 3).reshape(B, S, num_head * dim_head)
    out = out @ params["w_out"] + params["b_out"][0]
    out = rms(out, params["g_out"][0])
    x = x + out

    h2 = ln(x, params["ln2_w"][0], params["ln2_b"][0])
    ff = h2 @ params["w_ff1"] + params["b_ff1"][0]
    ff = ff * jax.nn.sigmoid(ff)
    ff = ff @ params["w_ff2"] + params["b_ff2"][0]
    return x + ff


def init_params(key, dim, dim_ff):
    """Deterministic synthetic init. Linear weights are stored (in, out)."""
    hidden = dim  # dim_head * num_head == dim_base
    ks = jax.random.split(key, 8)
    s = 0.02
    return {
        "ln1_w": jnp.ones((1, dim), jnp.float32),
        "ln1_b": jnp.zeros((1, dim), jnp.float32),
        "w_qkv": s * jax.random.normal(ks[0], (dim, 3 * hidden), jnp.float32),
        "b_qkv": s * jax.random.normal(ks[1], (1, 3 * hidden), jnp.float32),
        "rms_q_g": jnp.ones((1, hidden), jnp.float32),
        "rms_k_g": jnp.ones((1, hidden), jnp.float32),
        "w_out": s * jax.random.normal(ks[2], (hidden, dim), jnp.float32),
        "b_out": s * jax.random.normal(ks[3], (1, dim), jnp.float32),
        "g_out": jnp.ones((1, dim), jnp.float32),
        "ln2_w": jnp.ones((1, dim), jnp.float32),
        "ln2_b": jnp.zeros((1, dim), jnp.float32),
        "w_ff1": s * jax.random.normal(ks[4], (dim, dim_ff), jnp.float32),
        "b_ff1": s * jax.random.normal(ks[5], (1, dim_ff), jnp.float32),
        "w_ff2": s * jax.random.normal(ks[6], (dim_ff, dim), jnp.float32),
        "b_ff2": s * jax.random.normal(ks[7], (1, dim), jnp.float32),
    }


if __name__ == "__main__":
    # dim_base=128 keeps every block lane-dense (last dim = 128 lanes);
    # B=2 gives two "parallel" grid steps (both v7x TensorCores).
    B, S, D = 2, 16, 128
    NUM_HEAD = 4
    DIM_HEAD = D // NUM_HEAD
    DIM_FF = 256

    key = jax.random.PRNGKey(0)
    kx, kp = jax.random.split(key)
    x = jax.random.normal(kx, (B, S, D), jnp.float32)
    params = init_params(kp, D, DIM_FF)

    out = decoder_block(x, params, num_head=NUM_HEAD, dim_head=DIM_HEAD)
    out = jax.block_until_ready(out)

    # Reference uses the same bf16-rounded weights (f32 math) so the check
    # isolates kernel correctness from weight quantization.
    ref_params = dict(params)
    for name in ("w_qkv", "w_out", "w_ff1", "w_ff2"):
        ref_params[name] = params[name].astype(jnp.bfloat16).astype(jnp.float32)
    ref = decoder_block_reference(x, ref_params, num_head=NUM_HEAD, dim_head=DIM_HEAD)

    assert out.shape == (B, S, D)
    assert jnp.all(jnp.isfinite(out))
    max_err = jnp.max(jnp.abs(out - ref))
    assert jnp.allclose(out, ref, rtol=2e-2, atol=2e-2), f"max abs err {max_err}"
    print("KERNEL_OK")
</pallas_src>

<mosaic_0001>
module attributes {stable_mosaic.version = 11 : i64} {
  func.func @decoder_block_kernel(%arg0: i32, %arg1: memref<1x16x128xf32, #tpu.memory_space<vmem>>, %arg2: memref<1x128xf32, #tpu.memory_space<vmem>>, %arg3: memref<1x128xf32, #tpu.memory_space<vmem>>, %arg4: memref<128x384xbf16, #tpu.memory_space<vmem>>, %arg5: memref<1x384xf32, #tpu.memory_space<vmem>>, %arg6: memref<1x128xf32, #tpu.memory_space<vmem>>, %arg7: memref<1x128xf32, #tpu.memory_space<vmem>>, %arg8: memref<128x128xbf16, #tpu.memory_space<vmem>>, %arg9: memref<1x128xf32, #tpu.memory_space<vmem>>, %arg10: memref<1x128xf32, #tpu.memory_space<vmem>>, %arg11: memref<1x128xf32, #tpu.memory_space<vmem>>, %arg12: memref<1x128xf32, #tpu.memory_space<vmem>>, %arg13: memref<128x256xbf16, #tpu.memory_space<vmem>>, %arg14: memref<1x256xf32, #tpu.memory_space<vmem>>, %arg15: memref<256x128xbf16, #tpu.memory_space<vmem>>, %arg16: memref<1x128xf32, #tpu.memory_space<vmem>>, %arg17: memref<1x16x128xf32, #tpu.memory_space<vmem>>) attributes {dimension_semantics = [#tpu.dimension_semantics<parallel>], iteration_bounds = array<i64: 2>, scalar_prefetch = 0 : i64, scratch_operands = 0 : i64, tpu.core_type = #tpu.core_type<tc>, window_params = [{transform_indices = @transform_0, window_bounds = array<i64: 1, 16, 128>}, {pipeline_mode = #tpu.pipeline_mode<synchronous>, transform_indices = @transform_1, window_bounds = array<i64: 1, 128>}, {pipeline_mode = #tpu.pipeline_mode<synchronous>, transform_indices = @transform_2, window_bounds = array<i64: 1, 128>}, {pipeline_mode = #tpu.pipeline_mode<synchronous>, transform_indices = @transform_3, window_bounds = array<i64: 128, 384>}, {pipeline_mode = #tpu.pipeline_mode<synchronous>, transform_indices = @transform_4, window_bounds = array<i64: 1, 384>}, {pipeline_mode = #tpu.pipeline_mode<synchronous>, transform_indices = @transform_5, window_bounds = array<i64: 1, 128>}, {pipeline_mode = #tpu.pipeline_mode<synchronous>, transform_indices = @transform_6, window_bounds = array<i64: 1, 128>}, {pipeline_mode = #tpu.pipeline_mode<synchronous>, transform_indices = @transform_7, window_bounds = array<i64: 128, 128>}, {pipeline_mode = #tpu.pipeline_mode<synchronous>, transform_indices = @transform_8, window_bounds = array<i64: 1, 128>}, {pipeline_mode = #tpu.pipeline_mode<synchronous>, transform_indices = @transform_9, window_bounds = array<i64: 1, 128>}, {pipeline_mode = #tpu.pipeline_mode<synchronous>, transform_indices = @transform_10, window_bounds = array<i64: 1, 128>}, {pipeline_mode = #tpu.pipeline_mode<synchronous>, transform_indices = @transform_11, window_bounds = array<i64: 1, 128>}, {pipeline_mode = #tpu.pipeline_mode<synchronous>, transform_indices = @transform_12, window_bounds = array<i64: 128, 256>}, {pipeline_mode = #tpu.pipeline_mode<synchronous>, transform_indices = @transform_13, window_bounds = array<i64: 1, 256>}, {pipeline_mode = #tpu.pipeline_mode<synchronous>, transform_indices = @transform_14, window_bounds = array<i64: 256, 128>}, {pipeline_mode = #tpu.pipeline_mode<synchronous>, transform_indices = @transform_15, window_bounds = array<i64: 1, 128>}, {transform_indices = @transform_16, window_bounds = array<i64: 1, 16, 128>}]} {
    %c0 = arith.constant 0 : index
    %c0_0 = arith.constant 0 : index
    %c0_1 = arith.constant 0 : index
    %0 = vector.load %arg1[%c0, %c0_0, %c0_1] : memref<1x16x128xf32, #tpu.memory_space<vmem>>, vector<1x16x128xf32>
    %1 = vector.shape_cast %0 : vector<1x16x128xf32> to vector<16x128xf32>
    %c0_2 = arith.constant 0 : index
    %c0_3 = arith.constant 0 : index
    %2 = vector.load %arg2[%c0_2, %c0_3] : memref<1x128xf32, #tpu.memory_space<vmem>>, vector<1x128xf32>
    %3 = vector.shape_cast %2 : vector<1x128xf32> to vector<128xf32>
    %c0_4 = arith.constant 0 : index
    %c0_5 = arith.constant 0 : index
    %4 = vector.load %arg3[%c0_4, %c0_5] : memref<1x128xf32, #tpu.memory_space<vmem>>, vector<1x128xf32>
    %5 = vector.shape_cast %4 : vector<1x128xf32> to vector<128xf32>
    %cst = arith.constant dense<0.000000e+00> : vector<16xf32>
    %6 = vector.multi_reduction <add>, %1, %cst [1] : vector<16x128xf32> to vector<16xf32>
    %7 = vector.shape_cast %6 : vector<16xf32> to vector<16x1xf32>
    %cst_6 = arith.constant 1.280000e+02 : f32
    %8 = vector.broadcast %cst_6 : f32 to vector<16x1xf32>
    %9 = arith.divf %7, %8 : vector<16x1xf32>
    %10 = vector.broadcast %9 : vector<16x1xf32> to vector<16x128xf32>
    %11 = arith.subf %1, %10 : vector<16x128xf32>
    %12 = arith.mulf %11, %11 : vector<16x128xf32>
    %cst_7 = arith.constant dense<0.000000e+00> : vector<16xf32>
    %13 = vector.multi_reduction <add>, %12, %cst_7 [1] : vector<16x128xf32> to vector<16xf32>
    %14 = vector.shape_cast %13 : vector<16xf32> to vector<16x1xf32>
    %cst_8 = arith.constant 1.280000e+02 : f32
    %15 = vector.broadcast %cst_8 : f32 to vector<16x1xf32>
    %16 = arith.divf %14, %15 : vector<16x1xf32>
    %17 = vector.broadcast %9 : vector<16x1xf32> to vector<16x128xf32>
    %18 = arith.subf %1, %17 : vector<16x128xf32>
    %cst_9 = arith.constant 9.99999997E-7 : f32
    %19 = vector.broadcast %cst_9 : f32 to vector<16x1xf32>
    %20 = arith.addf %16, %19 : vector<16x1xf32>
    %21 = math.rsqrt %20 : vector<16x1xf32>
    %22 = vector.broadcast %21 : vector<16x1xf32> to vector<16x128xf32>
    %23 = arith.mulf %18, %22 : vector<16x128xf32>
    %24 = vector.shape_cast %3 : vector<128xf32> to vector<1x128xf32>
    %25 = vector.broadcast %24 : vector<1x128xf32> to vector<16x128xf32>
    %26 = arith.mulf %23, %25 : vector<16x128xf32>
    %27 = vector.shape_cast %5 : vector<128xf32> to vector<1x128xf32>
    %28 = vector.broadcast %27 : vector<1x128xf32> to vector<16x128xf32>
    %29 = arith.addf %26, %28 : vector<16x128xf32>
    %30 = arith.truncf %29 : vector<16x128xf32> to vector<16x128xbf16>
    %c0_10 = arith.constant 0 : index
    %c0_11 = arith.constant 0 : index
    %31 = vector.load %arg4[%c0_10, %c0_11] : memref<128x384xbf16, #tpu.memory_space<vmem>>, vector<128x384xbf16>
    %cst_12 = arith.constant dense<0.000000e+00> : vector<16x384xf32>
    %32 = tpu.matmul %30, %31, %cst_12 {dimension_numbers = #tpu.dot_dimension_numbers<[1], [0], [0], [1], [0, 0, 1, 1], [], []>} : vector<16x128xbf16>, vector<128x384xbf16>, vector<16x384xf32> -> vector<16x384xf32>
    %c0_13 = arith.constant 0 : index
    %c0_14 = arith.constant 0 : index
    %33 = vector.load %arg5[%c0_13, %c0_14] : memref<1x384xf32, #tpu.memory_space<vmem>>, vector<1x384xf32>
    %34 = vector.shape_cast %33 : vector<1x384xf32> to vector<384xf32>
    %35 = vector.shape_cast %34 : vector<384xf32> to vector<1x384xf32>
    %36 = vector.broadcast %35 : vector<1x384xf32> to vector<16x384xf32>
    %37 = arith.addf %32, %36 : vector<16x384xf32>
    %38 = vector.extract_strided_slice %37 {offsets = [0, 0], sizes = [16, 128], strides = [1, 1]} : vector<16x384xf32> to vector<16x128xf32>
    %c0_15 = arith.constant 0 : index
    %c0_16 = arith.constant 0 : index
    %39 = vector.load %arg6[%c0_15, %c0_16] : memref<1x128xf32, #tpu.memory_space<vmem>>, vector<1x128xf32>
    %40 = vector.shape_cast %39 : vector<1x128xf32> to vector<128xf32>
    %41 = arith.mulf %38, %38 : vector<16x128xf32>
    %cst_17 = arith.constant dense<0.000000e+00> : vector<16xf32>
    %42 = vector.multi_reduction <add>, %41, %cst_17 [1] : vector<16x128xf32> to vector<16xf32>
    %43 = vector.shape_cast %42 : vector<16xf32> to vector<16x1xf32>
    %cst_18 = arith.constant 1.000000e-24 : f32
    %44 = vector.broadcast %cst_18 : f32 to vector<16x1xf32>
    %45 = arith.maximumf %43, %44 : vector<16x1xf32>
    %46 = math.rsqrt %45 : vector<16x1xf32>
    %47 = vector.broadcast %46 : vector<16x1xf32> to vector<16x128xf32>
    %48 = arith.mulf %38, %47 : vector<16x128xf32>
    %49 = vector.shape_cast %40 : vector<128xf32> to vector<1x128xf32>
    %50 = vector.broadcast %49 : vector<1x128xf32> to vector<16x128xf32>
    %51 = arith.mulf %48, %50 : vector<16x128xf32>
    %52 = vector.extract_strided_slice %37 {offsets = [0, 128], sizes = [16, 128], strides = [1, 1]} : vector<16x384xf32> to vector<16x128xf32>
    %c0_19 = arith.constant 0 : index
    %c0_20 = arith.constant 0 : index
    %53 = vector.load %arg7[%c0_19, %c0_20] : memref<1x128xf32, #tpu.memory_space<vmem>>, vector<1x128xf32>
    %54 = vector.shape_cast %53 : vector<1x128xf32> to vector<128xf32>
    %55 = arith.mulf %52, %52 : vector<16x128xf32>
    %cst_21 = arith.constant dense<0.000000e+00> : vector<16xf32>
    %56 = vector.multi_reduction <add>, %55, %cst_21 [1] : vector<16x128xf32> to vector<16xf32>
    %57 = vector.shape_cast %56 : vector<16xf32> to vector<16x1xf32>
    %cst_22 = arith.constant 1.000000e-24 : f32
    %58 = vector.broadcast %cst_22 : f32 to vector<16x1xf32>
    %59 = arith.maximumf %57, %58 : vector<16x1xf32>
    %60 = math.rsqrt %59 : vector<16x1xf32>
    %61 = vector.broadcast %60 : vector<16x1xf32> to vector<16x128xf32>
    %62 = arith.mulf %52, %61 : vector<16x128xf32>
    %63 = vector.shape_cast %54 : vector<128xf32> to vector<1x128xf32>
    %64 = vector.broadcast %63 : vector<1x128xf32> to vector<16x128xf32>
    %65 = arith.mulf %62, %64 : vector<16x128xf32>
    %66 = vector.extract_strided_slice %37 {offsets = [0, 256], sizes = [16, 128], strides = [1, 1]} : vector<16x384xf32> to vector<16x128xf32>
    %67 = vector.extract_strided_slice %51 {offsets = [0, 0], sizes = [16, 32], strides = [1, 1]} : vector<16x128xf32> to vector<16x32xf32>
    %68 = vector.extract_strided_slice %51 {offsets = [0, 32], sizes = [16, 32], strides = [1, 1]} : vector<16x128xf32> to vector<16x32xf32>
    %69 = vector.extract_strided_slice %51 {offsets = [0, 64], sizes = [16, 32], strides = [1, 1]} : vector<16x128xf32> to vector<16x32xf32>
    %70 = vector.extract_strided_slice %51 {offsets = [0, 96], sizes = [16, 32], strides = [1, 1]} : vector<16x128xf32> to vector<16x32xf32>
    %71 = vector.shape_cast %67 : vector<16x32xf32> to vector<1x16x32xf32>
    %72 = vector.shape_cast %68 : vector<16x32xf32> to vector<1x16x32xf32>
    %73 = vector.shape_cast %69 : vector<16x32xf32> to vector<1x16x32xf32>
    %74 = vector.shape_cast %70 : vector<16x32xf32> to vector<1x16x32xf32>
    %75 = tpu.concatenate %71, %72, %73, %74 in 0 : vector<1x16x32xf32>, vector<1x16x32xf32>, vector<1x16x32xf32>, vector<1x16x32xf32> -> vector<4x16x32xf32>
    %76 = arith.truncf %75 : vector<4x16x32xf32> to vector<4x16x32xbf16>
    %77 = vector.extract_strided_slice %65 {offsets = [0, 0], sizes = [16, 32], strides = [1, 1]} : vector<16x128xf32> to vector<16x32xf32>
    %78 = vector.extract_strided_slice %65 {offsets = [0, 32], sizes = [16, 32], strides = [1, 1]} : vector<16x128xf32> to vector<16x32xf32>
    %79 = vector.extract_strided_slice %65 {offsets = [0, 64], sizes = [16, 32], strides = [1, 1]} : vector<16x128xf32> to vector<16x32xf32>
    %80 = vector.extract_strided_slice %65 {offsets = [0, 96], sizes = [16, 32], strides = [1, 1]} : vector<16x128xf32> to vector<16x32xf32>
    %81 = vector.shape_cast %77 : vector<16x32xf32> to vector<1x16x32xf32>
    %82 = vector.shape_cast %78 : vector<16x32xf32> to vector<1x16x32xf32>
    %83 = vector.shape_cast %79 : vector<16x32xf32> to vector<1x16x32xf32>
    %84 = vector.shape_cast %80 : vector<16x32xf32> to vector<1x16x32xf32>
    %85 = tpu.concatenate %81, %82, %83, %84 in 0 : vector<1x16x32xf32>, vector<1x16x32xf32>, vector<1x16x32xf32>, vector<1x16x32xf32> -> vector<4x16x32xf32>
    %86 = arith.truncf %85 : vector<4x16x32xf32> to vector<4x16x32xbf16>
    %87 = vector.extract_strided_slice %66 {offsets = [0, 0], sizes = [16, 32], strides = [1, 1]} : vector<16x128xf32> to vector<16x32xf32>
    %88 = vector.extract_strided_slice %66 {offsets = [0, 32], sizes = [16, 32], strides = [1, 1]} : vector<16x128xf32> to vector<16x32xf32>
    %89 = vector.extract_strided_slice %66 {offsets = [0, 64], sizes = [16, 32], strides = [1, 1]} : vector<16x128xf32> to vector<16x32xf32>
    %90 = vector.extract_strided_slice %66 {offsets = [0, 96], sizes = [16, 32], strides = [1, 1]} : vector<16x128xf32> to vector<16x32xf32>
    %91 = vector.shape_cast %87 : vector<16x32xf32> to vector<1x16x32xf32>
    %92 = vector.shape_cast %88 : vector<16x32xf32> to vector<1x16x32xf32>
    %93 = vector.shape_cast %89 : vector<16x32xf32> to vector<1x16x32xf32>
    %94 = vector.shape_cast %90 : vector<16x32xf32> to vector<1x16x32xf32>
    %95 = tpu.concatenate %91, %92, %93, %94 in 0 : vector<1x16x32xf32>, vector<1x16x32xf32>, vector<1x16x32xf32>, vector<1x16x32xf32> -> vector<4x16x32xf32>
    %96 = arith.truncf %95 : vector<4x16x32xf32> to vector<4x16x32xbf16>
    "tpu.trace_start"() <{level = 10 : i32, message = "hqd,hkd->hqk"}> : () -> ()
    %cst_23 = arith.constant dense<0.000000e+00> : vector<4x16x16xf32>
    %97 = tpu.matmul %76, %86, %cst_23 {dimension_numbers = #tpu.dot_dimension_numbers<[2], [2], [1], [1], [0, 0, 0, 1, 1, 1], [0], [0]>} : vector<4x16x32xbf16>, vector<4x16x32xbf16>, vector<4x16x16xf32> -> vector<4x16x16xf32>
    "tpu.trace_stop"() : () -> ()
    %cst_24 = arith.constant dense<0xFF800000> : vector<4x16xf32>
    %98 = vector.multi_reduction <maximumf>, %97, %cst_24 [2] : vector<4x16x16xf32> to vector<4x16xf32>
    %99 = vector.shape_cast %98 : vector<4x16xf32> to vector<4x16x1xf32>
    %100 = vector.broadcast %99 : vector<4x16x1xf32> to vector<4x16x16xf32>
    %101 = arith.subf %97, %100 : vector<4x16x16xf32>
    %102 = math.exp %101 : vector<4x16x16xf32>
    %cst_25 = arith.constant dense<0.000000e+00> : vector<4x16xf32>
    %103 = vector.multi_reduction <add>, %102, %cst_25 [2] : vector<4x16x16xf32> to vector<4x16xf32>
    %104 = vector.shape_cast %103 : vector<4x16xf32> to vector<4x16x1xf32>
    %105 = tpu.reciprocal %104 {approx = true} : vector<4x16x1xf32> -> vector<4x16x1xf32>
    %106 = vector.broadcast %105 : vector<4x16x1xf32> to vector<4x16x16xf32>
    %107 = arith.mulf %102, %106 : vector<4x16x16xf32>
    %108 = arith.truncf %107 : vector<4x16x16xf32> to vector<4x16x16xbf16>
    "tpu.trace_start"() <{level = 10 : i32, message = "hqk,hkd->hqd"}> : () -> ()
    %cst_26 = arith.constant dense<0.000000e+00> : vector<4x16x32xf32>
    %109 = tpu.matmul %108, %96, %cst_26 {dimension_numbers = #tpu.dot_dimension_numbers<[2], [1], [1], [2], [0, 0, 0, 1, 1, 2], [0], [0]>} : vector<4x16x16xbf16>, vector<4x16x32xbf16>, vector<4x16x32xf32> -> vector<4x16x32xf32>
    "tpu.trace_stop"() : () -> ()
    %110 = vector.extract_strided_slice %109 {offsets = [0, 0, 0], sizes = [1, 16, 32], strides = [1, 1, 1]} : vector<4x16x32xf32> to vector<1x16x32xf32>
    %111 = vector.shape_cast %110 : vector<1x16x32xf32> to vector<16x32xf32>
    %112 = vector.extract_strided_slice %109 {offsets = [1, 0, 0], sizes = [1, 16, 32], strides = [1, 1, 1]} : vector<4x16x32xf32> to vector<1x16x32xf32>
    %113 = vector.shape_cast %112 : vector<1x16x32xf32> to vector<16x32xf32>
    %114 = vector.extract_strided_slice %109 {offsets = [2, 0, 0], sizes = [1, 16, 32], strides = [1, 1, 1]} : vector<4x16x32xf32> to vector<1x16x32xf32>
    %115 = vector.shape_cast %114 : vector<1x16x32xf32> to vector<16x32xf32>
    %116 = vector.extract_strided_slice %109 {offsets = [3, 0, 0], sizes = [1, 16, 32], strides = [1, 1, 1]} : vector<4x16x32xf32> to vector<1x16x32xf32>
    %117 = vector.shape_cast %116 : vector<1x16x32xf32> to vector<16x32xf32>
    %118 = tpu.concatenate %111, %113, %115, %117 in 1 : vector<16x32xf32>, vector<16x32xf32>, vector<16x32xf32>, vector<16x32xf32> -> vector<16x128xf32>
    %119 = arith.truncf %118 : vector<16x128xf32> to vector<16x128xbf16>
    %c0_27 = arith.constant 0 : index
    %c0_28 = arith.constant 0 : index
    %120 = vector.load %arg8[%c0_27, %c0_28] : memref<128x128xbf16, #tpu.memory_space<vmem>>, vector<128x128xbf16>
    %cst_29 = arith.constant dense<0.000000e+00> : vector<16x128xf32>
    %121 = tpu.matmul %119, %120, %cst_29 {dimension_numbers = #tpu.dot_dimension_numbers<[1], [0], [0], [1], [0, 0, 1, 1], [], []>} : vector<16x128xbf16>, vector<128x128xbf16>, vector<16x128xf32> -> vector<16x128xf32>
    %c0_30 = arith.constant 0 : index
    %c0_31 = arith.constant 0 : index
    %122 = vector.load %arg9[%c0_30, %c0_31] : memref<1x128xf32, #tpu.memory_space<vmem>>, vector<1x128xf32>
    %123 = vector.shape_cast %122 : vector<1x128xf32> to vector<128xf32>
    %124 = vector.shape_cast %123 : vector<128xf32> to vector<1x128xf32>
    %125 = vector.broadcast %124 : vector<1x128xf32> to vector<16x128xf32>
    %126 = arith.addf %121, %125 : vector<16x128xf32>
    %c0_32 = arith.constant 0 : index
    %c0_33 = arith.constant 0 : index
    %127 = vector.load %arg10[%c0_32, %c0_33] : memref<1x128xf32, #tpu.memory_space<vmem>>, vector<1x128xf32>
    %128 = vector.shape_cast %127 : vector<1x128xf32> to vector<128xf32>
    %129 = arith.mulf %126, %126 : vector<16x128xf32>
    %cst_34 = arith.constant dense<0.000000e+00> : vector<16xf32>
    %130 = vector.multi_reduction <add>, %129, %cst_34 [1] : vector<16x128xf32> to vector<16xf32>
    %131 = vector.shape_cast %130 : vector<16xf32> to vector<16x1xf32>
    %cst_35 = arith.constant 1.000000e-24 : f32
    %132 = vector.broadcast %cst_35 : f32 to vector<16x1xf32>
    %133 = arith.maximumf %131, %132 : vector<16x1xf32>
    %134 = math.rsqrt %133 : vector<16x1xf32>
    %135 = vector.broadcast %134 : vector<16x1xf32> to vector<16x128xf32>
    %136 = arith.mulf %126, %135 : vector<16x128xf32>
    %137 = vector.shape_cast %128 : vector<128xf32> to vector<1x128xf32>
    %138 = vector.broadcast %137 : vector<1x128xf32> to vector<16x128xf32>
    %139 = arith.mulf %136, %138 : vector<16x128xf32>
    %140 = arith.addf %1, %139 : vector<16x128xf32>
    %c0_36 = arith.constant 0 : index
    %c0_37 = arith.constant 0 : index
    %141 = vector.load %arg11[%c0_36, %c0_37] : memref<1x128xf32, #tpu.memory_space<vmem>>, vector<1x128xf32>
    %142 = vector.shape_cast %141 : vector<1x128xf32> to vector<128xf32>
    %c0_38 = arith.constant 0 : index
    %c0_39 = arith.constant 0 : index
    %143 = vector.load %arg12[%c0_38, %c0_39] : memref<1x128xf32, #tpu.memory_space<vmem>>, vector<1x128xf32>
    %144 = vector.shape_cast %143 : vector<1x128xf32> to vector<128xf32>
    %cst_40 = arith.constant dense<0.000000e+00> : vector<16xf32>
    %145 = vector.multi_reduction <add>, %140, %cst_40 [1] : vector<16x128xf32> to vector<16xf32>
    %146 = vector.shape_cast %145 : vector<16xf32> to vector<16x1xf32>
    %cst_41 = arith.constant 1.280000e+02 : f32
    %147 = vector.broadcast %cst_41 : f32 to vector<16x1xf32>
    %148 = arith.divf %146, %147 : vector<16x1xf32>
    %149 = vector.broadcast %148 : vector<16x1xf32> to vector<16x128xf32>
    %150 = arith.subf %140, %149 : vector<16x128xf32>
    %151 = arith.mulf %150, %150 : vector<16x128xf32>
    %cst_42 = arith.constant dense<0.000000e+00> : vector<16xf32>
    %152 = vector.multi_reduction <add>, %151, %cst_42 [1] : vector<16x128xf32> to vector<16xf32>
    %153 = vector.shape_cast %152 : vector<16xf32> to vector<16x1xf32>
    %cst_43 = arith.constant 1.280000e+02 : f32
    %154 = vector.broadcast %cst_43 : f32 to vector<16x1xf32>
    %155 = arith.divf %153, %154 : vector<16x1xf32>
    %156 = vector.broadcast %148 : vector<16x1xf32> to vector<16x128xf32>
    %157 = arith.subf %140, %156 : vector<16x128xf32>
    %cst_44 = arith.constant 9.99999997E-7 : f32
    %158 = vector.broadcast %cst_44 : f32 to vector<16x1xf32>
    %159 = arith.addf %155, %158 : vector<16x1xf32>
    %160 = math.rsqrt %159 : vector<16x1xf32>
    %161 = vector.broadcast %160 : vector<16x1xf32> to vector<16x128xf32>
    %162 = arith.mulf %157, %161 : vector<16x128xf32>
    %163 = vector.shape_cast %142 : vector<128xf32> to vector<1x128xf32>
    %164 = vector.broadcast %163 : vector<1x128xf32> to vector<16x128xf32>
    %165 = arith.mulf %162, %164 : vector<16x128xf32>
    %166 = vector.shape_cast %144 : vector<128xf32> to vector<1x128xf32>
    %167 = vector.broadcast %166 : vector<1x128xf32> to vector<16x128xf32>
    %168 = arith.addf %165, %167 : vector<16x128xf32>
    %169 = arith.truncf %168 : vector<16x128xf32> to vector<16x128xbf16>
    %c0_45 = arith.constant 0 : index
    %c0_46 = arith.constant 0 : index
    %170 = vector.load %arg13[%c0_45, %c0_46] : memref<128x256xbf16, #tpu.memory_space<vmem>>, vector<128x256xbf16>
    %cst_47 = arith.constant dense<0.000000e+00> : vector<16x256xf32>
    %171 = tpu.matmul %169, %170, %cst_47 {dimension_numbers = #tpu.dot_dimension_numbers<[1], [0], [0], [1], [0, 0, 1, 1], [], []>} : vector<16x128xbf16>, vector<128x256xbf16>, vector<16x256xf32> -> vector<16x256xf32>
    %c0_48 = arith.constant 0 : index
    %c0_49 = arith.constant 0 : index
    %172 = vector.load %arg14[%c0_48, %c0_49] : memref<1x256xf32, #tpu.memory_space<vmem>>, vector<1x256xf32>
    %173 = vector.shape_cast %172 : vector<1x256xf32> to vector<256xf32>
    %174 = vector.shape_cast %173 : vector<256xf32> to vector<1x256xf32>
    %175 = vector.broadcast %174 : vector<1x256xf32> to vector<16x256xf32>
    %176 = arith.addf %171, %175 : vector<16x256xf32>
    %177 = arith.negf %176 : vector<16x256xf32>
    %178 = math.exp %177 : vector<16x256xf32>
    %cst_50 = arith.constant 1.000000e+00 : f32
    %179 = vector.broadcast %cst_50 : f32 to vector<16x256xf32>
    %180 = arith.addf %179, %178 : vector<16x256xf32>
    %181 = arith.divf %179, %180 : vector<16x256xf32>
    %182 = arith.mulf %176, %181 : vector<16x256xf32>
    %183 = arith.truncf %182 : vector<16x256xf32> to vector<16x256xbf16>
    %c0_51 = arith.constant 0 : index
    %c0_52 = arith.constant 0 : index
    %184 = vector.load %arg15[%c0_51, %c0_52] : memref<256x128xbf16, #tpu.memory_space<vmem>>, vector<256x128xbf16>
    %cst_53 = arith.constant dense<0.000000e+00> : vector<16x128xf32>
    %185 = tpu.matmul %183, %184, %cst_53 {dimension_numbers = #tpu.dot_dimension_numbers<[1], [0], [0], [1], [0, 0, 1, 1], [], []>} : vector<16x256xbf16>, vector<256x128xbf16>, vector<16x128xf32> -> vector<16x128xf32>
    %c0_54 = arith.constant 0 : index
    %c0_55 = arith.constant 0 : index
    %186 = vector.load %arg16[%c0_54, %c0_55] : memref<1x128xf32, #tpu.memory_space<vmem>>, vector<1x128xf32>
    %187 = vector.shape_cast %186 : vector<1x128xf32> to vector<128xf32>
    %188 = vector.shape_cast %187 : vector<128xf32> to vector<1x128xf32>
    %189 = vector.broadcast %188 : vector<1x128xf32> to vector<16x128xf32>
    %190 = arith.addf %185, %189 : vector<16x128xf32>
    %191 = arith.addf %140, %190 : vector<16x128xf32>
    %c0_56 = arith.constant 0 : index
    %c0_57 = arith.constant 0 : index
    %c0_58 = arith.constant 0 : index
    %192 = vector.load %arg17[%c0_56, %c0_57, %c0_58] : memref<1x16x128xf32, #tpu.memory_space<vmem>>, vector<1x16x128xf32>
    %193 = vector.shape_cast %192 : vector<1x16x128xf32> to vector<16x128xf32>
    %194 = vector.shape_cast %191 : vector<16x128xf32> to vector<1x16x128xf32>
    tpu.vector_store %arg17[%c0_56, %c0_57, %c0_58], %194 {strides = array<i32>} : memref<1x16x128xf32, #tpu.memory_space<vmem>>, vector<1x16x128xf32>,
    return
  }
  func.func @transform_0(%arg0: i32) -> (i32, i32, i32) {
    %c0_i32 = arith.constant 0 : i32
    %c0_i32_0 = arith.constant 0 : i32
    %c0_i32_1 = arith.constant 0 : i32
    return %arg0, %c0_i32, %c0_i32_0 : i32, i32, i32
  }
  func.func @transform_1(%arg0: i32) -> (i32, i32) {
    %c0_i32 = arith.constant 0 : i32
    %c0_i32_0 = arith.constant 0 : i32
    %c0_i32_1 = arith.constant 0 : i32
    return %c0_i32, %c0_i32_0 : i32, i32
  }
  func.func @transform_2(%arg0: i32) -> (i32, i32) {
    %c0_i32 = arith.constant 0 : i32
    %c0_i32_0 = arith.constant 0 : i32
    %c0_i32_1 = arith.constant 0 : i32
    return %c0_i32, %c0_i32_0 : i32, i32
  }
  func.func @transform_3(%arg0: i32) -> (i32, i32) {
    %c0_i32 = arith.constant 0 : i32
    %c0_i32_0 = arith.constant 0 : i32
    %c0_i32_1 = arith.constant 0 : i32
    return %c0_i32, %c0_i32_0 : i32, i32
  }
  func.func @transform_4(%arg0: i32) -> (i32, i32) {
    %c0_i32 = arith.constant 0 : i32
    %c0_i32_0 = arith.constant 0 : i32
    %c0_i32_1 = arith.constant 0 : i32
    return %c0_i32, %c0_i32_0 : i32, i32
  }
  func.func @transform_5(%arg0: i32) -> (i32, i32) {
    %c0_i32 = arith.constant 0 : i32
    %c0_i32_0 = arith.constant 0 : i32
    %c0_i32_1 = arith.constant 0 : i32
    return %c0_i32, %c0_i32_0 : i32, i32
  }
  func.func @transform_6(%arg0: i32) -> (i32, i32) {
    %c0_i32 = arith.constant 0 : i32
    %c0_i32_0 = arith.constant 0 : i32
    %c0_i32_1 = arith.constant 0 : i32
    return %c0_i32, %c0_i32_0 : i32, i32
  }
  func.func @transform_7(%arg0: i32) -> (i32, i32) {
    %c0_i32 = arith.constant 0 : i32
    %c0_i32_0 = arith.constant 0 : i32
    %c0_i32_1 = arith.constant 0 : i32
    return %c0_i32, %c0_i32_0 : i32, i32
  }
  func.func @transform_8(%arg0: i32) -> (i32, i32) {
    %c0_i32 = arith.constant 0 : i32
    %c0_i32_0 = arith.constant 0 : i32
    %c0_i32_1 = arith.constant 0 : i32
    return %c0_i32, %c0_i32_0 : i32, i32
  }
  func.func @transform_9(%arg0: i32) -> (i32, i32) {
    %c0_i32 = arith.constant 0 : i32
    %c0_i32_0 = arith.constant 0 : i32
    %c0_i32_1 = arith.constant 0 : i32
    return %c0_i32, %c0_i32_0 : i32, i32
  }
  func.func @transform_10(%arg0: i32) -> (i32, i32) {
    %c0_i32 = arith.constant 0 : i32
    %c0_i32_0 = arith.constant 0 : i32
    %c0_i32_1 = arith.constant 0 : i32
    return %c0_i32, %c0_i32_0 : i32, i32
  }
  func.func @transform_11(%arg0: i32) -> (i32, i32) {
    %c0_i32 = arith.constant 0 : i32
    %c0_i32_0 = arith.constant 0 : i32
    %c0_i32_1 = arith.constant 0 : i32
    return %c0_i32, %c0_i32_0 : i32, i32
  }
  func.func @transform_12(%arg0: i32) -> (i32, i32) {
    %c0_i32 = arith.constant 0 : i32
    %c0_i32_0 = arith.constant 0 : i32
    %c0_i32_1 = arith.constant 0 : i32
    return %c0_i32, %c0_i32_0 : i32, i32
  }
  func.func @transform_13(%arg0: i32) -> (i32, i32) {
    %c0_i32 = arith.constant 0 : i32
    %c0_i32_0 = arith.constant 0 : i32
    %c0_i32_1 = arith.constant 0 : i32
    return %c0_i32, %c0_i32_0 : i32, i32
  }
  func.func @transform_14(%arg0: i32) -> (i32, i32) {
    %c0_i32 = arith.constant 0 : i32
    %c0_i32_0 = arith.constant 0 : i32
    %c0_i32_1 = arith.constant 0 : i32
    return %c0_i32, %c0_i32_0 : i32, i32
  }
  func.func @transform_15(%arg0: i32) -> (i32, i32) {
    %c0_i32 = arith.constant 0 : i32
    %c0_i32_0 = arith.constant 0 : i32
    %c0_i32_1 = arith.constant 0 : i32
    return %c0_i32, %c0_i32_0 : i32, i32
  }
  func.func @transform_16(%arg0: i32) -> (i32, i32, i32) {
    %c0_i32 = arith.constant 0 : i32
    %c0_i32_0 = arith.constant 0 : i32
    %c0_i32_1 = arith.constant 0 : i32
    return %arg0, %c0_i32, %c0_i32_0 : i32, i32, i32
  }
}

</mosaic_0001>

<llo_original>
// kernel: tpu_custom_call.1
$region0: #{tpu_custom_call.1}
  #allocation0 [shape = 'u32[]', space=smem, size = 0x4, offset = 0x4, fixed_abs, tag = 'smem constant byte address 0x4 - core index']
  #allocation1 [shape = 'u32[144,128]{1,0:T(1,128)}', space=vmem, size = 0x12000, scoped, tag = 'internal scratch']
  %s0 = inlined_call_operand.hbm [shape: f32[2,16,128], index: 0, kind: input, shape index: {}]
  %s1 = inlined_call_operand.vmem [shape: f32[1,128], index: 1, kind: input, shape index: {}]
  %s2 = inlined_call_operand.vmem [shape: f32[1,128], index: 2, kind: input, shape index: {}]
  %s3 = inlined_call_operand.hbm [shape: bf16[128,384], index: 3, kind: input, shape index: {}]
  %s4 = inlined_call_operand.vmem [shape: f32[1,384], index: 4, kind: input, shape index: {}]
  %s5 = inlined_call_operand.vmem [shape: f32[1,128], index: 5, kind: input, shape index: {}]
  %s6 = inlined_call_operand.vmem [shape: f32[1,128], index: 6, kind: input, shape index: {}]
  %s7 = inlined_call_operand.hbm [shape: bf16[128,128], index: 7, kind: input, shape index: {}]
  %s8 = inlined_call_operand.vmem [shape: f32[1,128], index: 8, kind: input, shape index: {}]
  %s9 = inlined_call_operand.vmem [shape: f32[1,128], index: 9, kind: input, shape index: {}]
  %s10 = inlined_call_operand.vmem [shape: f32[1,128], index: 10, kind: input, shape index: {}]
  %s11 = inlined_call_operand.vmem [shape: f32[1,128], index: 11, kind: input, shape index: {}]
  %s12 = inlined_call_operand.hbm [shape: bf16[128,256], index: 12, kind: input, shape index: {}]
  %s13 = inlined_call_operand.vmem [shape: f32[1,256], index: 13, kind: input, shape index: {}]
  %s14 = inlined_call_operand.hbm [shape: bf16[256,128], index: 14, kind: input, shape index: {}]
  %s15 = inlined_call_operand.vmem [shape: f32[1,128], index: 15, kind: input, shape index: {}]
  %s16 = inlined_call_operand.hbm [shape: f32[2,16,128], index: 16, kind: output, shape index: {}]
  %s17 = sld [smem:[#allocation0]]
  $region117: #{tpu_custom_call.1} parent=0
    _
  %s19 = ssub.s32 1, %s17
  %s20 = scalar_select 0, %s19, %s17
  $region1: #{tpu_custom_call.1} parent=0
    #allocation2 [shape = 'u8[16384]{0}', space=vmem, size = 0x4000, scoped, tag = 'input window, operand 0']
    #allocation3 [shape = 's32[2]{0}', space=sflag, size = 0x8, scoped, tag = 'scoped memory for tpu_custom_call.1']
    #allocation4 [shape = 's32[2]{0}', space=sflag, size = 0x8, scoped, tag = 'scoped memory for tpu_custom_call.1']
    #allocation5 [shape = 'u8[98304]{0}', space=vmem, size = 0x18000, scoped, tag = 'input window, operand 3, single buffered']
    #allocation6 [shape = 's32[1]{0}', space=sflag, size = 0x4, scoped, tag = 'scoped memory for tpu_custom_call.1']
    #allocation7 [shape = 'u8[32768]{0}', space=vmem, size = 0x8000, scoped, tag = 'input window, operand 7, single buffered']
    #allocation8 [shape = 'u8[65536]{0}', space=vmem, size = 0x10000, scoped, tag = 'input window, operand 12, single buffered']
    #allocation9 [shape = 's32[1]{0}', space=sflag, size = 0x4, scoped, tag = 'scoped memory for tpu_custom_call.1']
    #allocation10 [shape = 'u8[65536]{0}', space=vmem, size = 0x10000, scoped, tag = 'input window, operand 14, single buffered']
    #allocation11 [shape = 'u8[16384]{0}', space=vmem, size = 0x4000, scoped, tag = 'output window, operand 0']
    %21 = vsyncpa [#allocation3], 0
    %s22 = scalar_lea.sflag [#allocation3], 1
    %23 = vsyncpa %s22, 0
    %24 = vsyncpa [#allocation6], 0
    %25 = vsyncpa [#allocation9], 0
    %26 = vsyncpa [#allocation4], 0
    %s27 = scalar_lea.sflag [#allocation4], 1
    %28 = vsyncpa %s27, 0
    loop: start=0, step=1, limit=4
    $region2: #{tpu_custom_call.1} parent=1 // loop_pre_header
      _
    $region3: #{tpu_custom_call.1} parent=1 // loop_header
      %s30 = sphi 0, %s34
      %p31 = scmp.ge.s32.totalorder %s30, 4
      %s40 = sphi 0, %s42
      %s43 = sphi 0, %s40
      %s44 = sphi 0, %s43
      %s60 = sphi 0, %s44
      %s64 = sphi 0, %s64
      %s66 = sphi 0, %s64
      %s67 = sphi 0, %s66
      %s81 = sphi 0, %s67
      %s85 = sphi 0, %s85
      %s87 = sphi 0, %s85
      %s88 = sphi 0, %s87
      %s102 = sphi 0, %s88
      %s106 = sphi 0, %s106
      %s108 = sphi 0, %s106
      %s109 = sphi 0, %s108
      %s123 = sphi 0, %s109
      %s127 = sphi 0, %s127
      %s129 = sphi 0, %s127
      %s130 = sphi 0, %s129
      %s144 = sphi 0, %s130
      %s148 = sphi 0, %s148
      %s150 = sphi 0, %s148
      %s151 = sphi 0, %s150
      %s165 = sphi 0, %s151
      %s169 = sphi 0, %s169
      %s171 = sphi 0, %s169
      %s172 = sphi 0, %s171
      %s186 = sphi 0, %s172
      %s190 = sphi 0, %s190
      %s192 = sphi 0, %s190
      %s193 = sphi 0, %s192
      %s207 = sphi 0, %s193
      %s211 = sphi 0, %s211
      %s213 = sphi 0, %s211
      %s214 = sphi 0, %s213
      %s228 = sphi 0, %s214
      %s232 = sphi 0, %s232
      %s234 = sphi 0, %s232
      %s235 = sphi 0, %s234
      %s249 = sphi 0, %s235
      %s253 = sphi 0, %s253
      %s255 = sphi 0, %s253
      %s256 = sphi 0, %s255
      %s270 = sphi 0, %s256
      %s274 = sphi 0, %s274
      %s276 = sphi 0, %s274
      %s277 = sphi 0, %s276
      %s291 = sphi 0, %s277
      %s295 = sphi 0, %s295
      %s297 = sphi 0, %s295
      %s298 = sphi 0, %s297
      %s312 = sphi 0, %s298
      %s316 = sphi 0, %s316
      %s318 = sphi 0, %s316
      %s319 = sphi 0, %s318
      %s333 = sphi 0, %s319
      %s337 = sphi 0, %s337
      %s339 = sphi 0, %s337
      %s340 = sphi 0, %s339
      %s354 = sphi 0, %s340
      %s358 = sphi 0, %s358
      %s360 = sphi 0, %s358
      %s361 = sphi 0, %s360
      %s375 = sphi 0, %s361
      %s381 = sphi 0, %s383
      %s384 = sphi 0, %s381
      %s385 = sphi 0, %s384
      %s401 = sphi 0, %s385
    $region4: #{tpu_custom_call.1} parent=1 // loop_header_branch
      %33 = sbr.rel (%p31) target = $region8
    $region5: #{tpu_custom_call.1} parent=1 // loop_body
      %s35 = ssub.s32 %s30, 1
      %s36 = ssub.s32 %s30, 2
      %s37 = sadd.s32 %s30, 1
      %s38 = ssub.s32 %s30, %s37
      %p39 = scmp.eq.s32.totalorder %s38, 0
      %s41 = sadd.s32 %s40, 1
      %s42 = scalar_select %p39, %s40, %s41
      %p45 = pneg %p39
      %p46 = scmp.eq.s32.totalorder %s30, 1
      %p47 = por %p45, %p46
      %p48 = scmp.ne.s32.totalorder %s40, %s43
      %p49 = scmp.eq.s32.totalorder %s30, 0
      %p50 = por %p48, %p49
      %p51 = scmp.ne.s32.totalorder %s40, %s43
      %p52 = scmp.eq.s32.totalorder %s35, 1
      %p53 = por %p51, %p52
      %p54 = scmp.ne.s32.totalorder %s43, %s44
      %p55 = scmp.eq.s32.totalorder %s35, 0
      %p56 = por %p54, %p55
      %p57 = scmp.ne.s32.totalorder %s43, %s44
      %p58 = scmp.eq.s32.totalorder %s36, 1
      %p59 = por %p57, %p58
      %p61 = scmp.ne.s32.totalorder %s44, %s60
      %p62 = scmp.eq.s32.totalorder %s36, 0
      %p63 = por %p61, %p62
      %s65 = sadd.s32 %s64, 1
      %p68 = scmp.eq.s32.totalorder %s30, 1
      %p69 = scmp.ne.s32.totalorder %s64, %s66
      %p70 = scmp.eq.s32.totalorder %s30, 0
      %p71 = por %p69, %p70
      %p72 = scmp.ne.s32.totalorder %s64, %s66
      %p73 = scmp.eq.s32.totalorder %s35, 1
      %p74 = por %p72, %p73
      %p75 = scmp.ne.s32.totalorder %s66, %s67
      %p76 = scmp.eq.s32.totalorder %s35, 0
      %p77 = por %p75, %p76
      %p78 = scmp.ne.s32.totalorder %s66, %s67
      %p79 = scmp.eq.s32.totalorder %s36, 1
      %p80 = por %p78, %p79
      %p82 = scmp.ne.s32.totalorder %s67, %s81
      %p83 = scmp.eq.s32.totalorder %s36, 0
      %p84 = por %p82, %p83
      %s86 = sadd.s32 %s85, 1
      %p89 = scmp.eq.s32.totalorder %s30, 1
      %p90 = scmp.ne.s32.totalorder %s85, %s87
      %p91 = scmp.eq.s32.totalorder %s30, 0
      %p92 = por %p90, %p91
      %p93 = scmp.ne.s32.totalorder %s85, %s87
      %p94 = scmp.eq.s32.totalorder %s35, 1
      %p95 = por %p93, %p94
      %p96 = scmp.ne.s32.totalorder %s87, %s88
      %p97 = scmp.eq.s32.totalorder %s35, 0
      %p98 = por %p96, %p97
      %p99 = scmp.ne.s32.totalorder %s87, %s88
      %p100 = scmp.eq.s32.totalorder %s36, 1
      %p101 = por %p99, %p100
      %p103 = scmp.ne.s32.totalorder %s88, %s102
      %p104 = scmp.eq.s32.totalorder %s36, 0
      %p105 = por %p103, %p104
      %s107 = sadd.s32 %s106, 1
      %p110 = scmp.eq.s32.totalorder %s30, 1
      %p111 = scmp.ne.s32.totalorder %s106, %s108
      %p112 = scmp.eq.s32.totalorder %s30, 0
      %p113 = por %p111, %p112
      %p114 = scmp.ne.s32.totalorder %s106, %s108
      %p115 = scmp.eq.s32.totalorder %s35, 1
      %p116 = por %p114, %p115
      %p117 = scmp.ne.s32.totalorder %s108, %s109
      %p118 = scmp.eq.s32.totalorder %s35, 0
      %p119 = por %p117, %p118
      %p120 = scmp.ne.s32.totalorder %s108, %s109
      %p121 = scmp.eq.s32.totalorder %s36, 1
      %p122 = por %p120, %p121
      %p124 = scmp.ne.s32.totalorder %s109, %s123
      %p125 = scmp.eq.s32.totalorder %s36, 0
      %p126 = por %p124, %p125
      %s128 = sadd.s32 %s127, 1
      %p131 = scmp.eq.s32.totalorder %s30, 1
      %p132 = scmp.ne.s32.totalorder %s127, %s129
      %p133 = scmp.eq.s32.totalorder %s30, 0
      %p134 = por %p132, %p133
      %p135 = scmp.ne.s32.totalorder %s127, %s129
      %p136 = scmp.eq.s32.totalorder %s35, 1
      %p137 = por %p135, %p136
      %p138 = scmp.ne.s32.totalorder %s129, %s130
      %p139 = scmp.eq.s32.totalorder %s35, 0
      %p140 = por %p138, %p139
      %p141 = scmp.ne.s32.totalorder %s129, %s130
      %p142 = scmp.eq.s32.totalorder %s36, 1
      %p143 = por %p141, %p142
      %p145 = scmp.ne.s32.totalorder %s130, %s144
      %p146 = scmp.eq.s32.totalorder %s36, 0
      %p147 = por %p145, %p146
      %s149 = sadd.s32 %s148, 1
      %p152 = scmp.eq.s32.totalorder %s30, 1
      %p153 = scmp.ne.s32.totalorder %s148, %s150
      %p154 = scmp.eq.s32.totalorder %s30, 0
      %p155 = por %p153, %p154
      %p156 = scmp.ne.s32.totalorder %s148, %s150
      %p157 = scmp.eq.s32.totalorder %s35, 1
      %p158 = por %p156, %p157
      %p159 = scmp.ne.s32.totalorder %s150, %s151
      %p160 = scmp.eq.s32.totalorder %s35, 0
      %p161 = por %p159, %p160
      %p162 = scmp.ne.s32.totalorder %s150, %s151
      %p163 = scmp.eq.s32.totalorder %s36, 1
      %p164 = por %p162, %p163
      %p166 = scmp.ne.s32.totalorder %s151, %s165
      %p167 = scmp.eq.s32.totalorder %s36, 0
      %p168 = por %p166, %p167
      %s170 = sadd.s32 %s169, 1
      %p173 = scmp.eq.s32.totalorder %s30, 1
      %p174 = scmp.ne.s32.totalorder %s169, %s171
      %p175 = scmp.eq.s32.totalorder %s30, 0
      %p176 = por %p174, %p175
      %p177 = scmp.ne.s32.totalorder %s169, %s171
      %p178 = scmp.eq.s32.totalorder %s35, 1
      %p179 = por %p177, %p178
      %p180 = scmp.ne.s32.totalorder %s171, %s172
      %p181 = scmp.eq.s32.totalorder %s35, 0
      %p182 = por %p180, %p181
      %p183 = scmp.ne.s32.totalorder %s171, %s172
      %p184 = scmp.eq.s32.totalorder %s36, 1
      %p185 = por %p183, %p184
      %p187 = scmp.ne.s32.totalorder %s172, %s186
      %p188 = scmp.eq.s32.totalorder %s36, 0
      %p189 = por %p187, %p188
      %s191 = sadd.s32 %s190, 1
      %p194 = scmp.eq.s32.totalorder %s30, 1
      %p195 = scmp.ne.s32.totalorder %s190, %s192
      %p196 = scmp.eq.s32.totalorder %s30, 0
      %p197 = por %p195, %p196
      %p198 = scmp.ne.s32.totalorder %s190, %s192
      %p199 = scmp.eq.s32.totalorder %s35, 1
      %p200 = por %p198, %p199
      %p201 = scmp.ne.s32.totalorder %s192, %s193
      %p202 = scmp.eq.s32.totalorder %s35, 0
      %p203 = por %p201, %p202
      %p204 = scmp.ne.s32.totalorder %s192, %s193
      %p205 = scmp.eq.s32.totalorder %s36, 1
      %p206 = por %p204, %p205
      %p208 = scmp.ne.s32.totalorder %s193, %s207
      %p209 = scmp.eq.s32.totalorder %s36, 0
      %p210 = por %p208, %p209
      %s212 = sadd.s32 %s211, 1
      %p215 = scmp.eq.s32.totalorder %s30, 1
      %p216 = scmp.ne.s32.totalorder %s211, %s213
      %p217 = scmp.eq.s32.totalorder %s30, 0
      %p218 = por %p216, %p217
      %p219 = scmp.ne.s32.totalorder %s211, %s213
      %p220 = scmp.eq.s32.totalorder %s35, 1
      %p221 = por %p219, %p220
      %p222 = scmp.ne.s32.totalorder %s213, %s214
      %p223 = scmp.eq.s32.totalorder %s35, 0
      %p224 = por %p222, %p223
      %p225 = scmp.ne.s32.totalorder %s213, %s214
      %p226 = scmp.eq.s32.totalorder %s36, 1
      %p227 = por %p225, %p226
      %p229 = scmp.ne.s32.totalorder %s214, %s228
      %p230 = scmp.eq.s32.totalorder %s36, 0
      %p231 = por %p229, %p230
      %s233 = sadd.s32 %s232, 1
      %p236 = scmp.eq.s32.totalorder %s30, 1
      %p237 = scmp.ne.s32.totalorder %s232, %s234
      %p238 = scmp.eq.s32.totalorder %s30, 0
      %p239 = por %p237, %p238
      %p240 = scmp.ne.s32.totalorder %s232, %s234
      %p241 = scmp.eq.s32.totalorder %s35, 1
      %p242 = por %p240, %p241
      %p243 = scmp.ne.s32.totalorder %s234, %s235
      %p244 = scmp.eq.s32.totalorder %s35, 0
      %p245 = por %p243, %p244
      %p246 = scmp.ne.s32.totalorder %s234, %s235
      %p247 = scmp.eq.s32.totalorder %s36, 1
      %p248 = por %p246, %p247
      %p250 = scmp.ne.s32.totalorder %s235, %s249
      %p251 = scmp.eq.s32.totalorder %s36, 0
      %p252 = por %p250, %p251
      %s254 = sadd.s32 %s253, 1
      %p257 = scmp.eq.s32.totalorder %s30, 1
      %p258 = scmp.ne.s32.totalorder %s253, %s255
      %p259 = scmp.eq.s32.totalorder %s30, 0
      %p260 = por %p258, %p259
      %p261 = scmp.ne.s32.totalorder %s253, %s255
      %p262 = scmp.eq.s32.totalorder %s35, 1
      %p263 = por %p261, %p262
      %p264 = scmp.ne.s32.totalorder %s255, %s256
      %p265 = scmp.eq.s32.totalorder %s35, 0
      %p266 = por %p264, %p265
      %p267 = scmp.ne.s32.totalorder %s255, %s256
      %p268 = scmp.eq.s32.totalorder %s36, 1
      %p269 = por %p267, %p268
      %p271 = scmp.ne.s32.totalorder %s256, %s270
      %p272 = scmp.eq.s32.totalorder %s36, 0
      %p273 = por %p271, %p272
      %s275 = sadd.s32 %s274, 1
      %p278 = scmp.eq.s32.totalorder %s30, 1
      %p279 = scmp.ne.s32.totalorder %s274, %s276
      %p280 = scmp.eq.s32.totalorder %s30, 0
      %p281 = por %p279, %p280
      %p282 = scmp.ne.s32.totalorder %s274, %s276
      %p283 = scmp.eq.s32.totalorder %s35, 1
      %p284 = por %p282, %p283
      %p285 = scmp.ne.s32.totalorder %s276, %s277
      %p286 = scmp.eq.s32.totalorder %s35, 0
      %p287 = por %p285, %p286
      %p288 = scmp.ne.s32.totalorder %s276, %s277
      %p289 = scmp.eq.s32.totalorder %s36, 1
      %p290 = por %p288, %p289
      %p292 = scmp.ne.s32.totalorder %s277, %s291
      %p293 = scmp.eq.s32.totalorder %s36, 0
      %p294 = por %p292, %p293
      %s296 = sadd.s32 %s295, 1
      %p299 = scmp.eq.s32.totalorder %s30, 1
      %p300 = scmp.ne.s32.totalorder %s295, %s297
      %p301 = scmp.eq.s32.totalorder %s30, 0
      %p302 = por %p300, %p301
      %p303 = scmp.ne.s32.totalorder %s295, %s297
      %p304 = scmp.eq.s32.totalorder %s35, 1
      %p305 = por %p303, %p304
      %p306 = scmp.ne.s32.totalorder %s297, %s298
      %p307 = scmp.eq.s32.totalorder %s35, 0
      %p308 = por %p306, %p307
      %p309 = scmp.ne.s32.totalorder %s297, %s298
      %p310 = scmp.eq.s32.totalorder %s36, 1
      %p311 = por %p309, %p310
      %p313 = scmp.ne.s32.totalorder %s298, %s312
      %p314 = scmp.eq.s32.totalorder %s36, 0
      %p315 = por %p313, %p314
      %s317 = sadd.s32 %s316, 1
      %p320 = scmp.eq.s32.totalorder %s30, 1
      %p321 = scmp.ne.s32.totalorder %s316, %s318
      %p322 = scmp.eq.s32.totalorder %s30, 0
      %p323 = por %p321, %p322
      %p324 = scmp.ne.s32.totalorder %s316, %s318
      %p325 = scmp.eq.s32.totalorder %s35, 1
      %p326 = por %p324, %p325
      %p327 = scmp.ne.s32.totalorder %s318, %s319
      %p328 = scmp.eq.s32.totalorder %s35, 0
      %p329 = por %p327, %p328
      %p330 = scmp.ne.s32.totalorder %s318, %s319
      %p331 = scmp.eq.s32.totalorder %s36, 1
      %p332 = por %p330, %p331
      %p334 = scmp.ne.s32.totalorder %s319, %s333
      %p335 = scmp.eq.s32.totalorder %s36, 0
      %p336 = por %p334, %p335
      %s338 = sadd.s32 %s337, 1
      %p341 = scmp.eq.s32.totalorder %s30, 1
      %p342 = scmp.ne.s32.totalorder %s337, %s339
      %p343 = scmp.eq.s32.totalorder %s30, 0
      %p344 = por %p342, %p343
      %p345 = scmp.ne.s32.totalorder %s337, %s339
      %p346 = scmp.eq.s32.totalorder %s35, 1
      %p347 = por %p345, %p346
      %p348 = scmp.ne.s32.totalorder %s339, %s340
      %p349 = scmp.eq.s32.totalorder %s35, 0
      %p350 = por %p348, %p349
      %p351 = scmp.ne.s32.totalorder %s339, %s340
      %p352 = scmp.eq.s32.totalorder %s36, 1
      %p353 = por %p351, %p352
      %p355 = scmp.ne.s32.totalorder %s340, %s354
      %p356 = scmp.eq.s32.totalorder %s36, 0
      %p357 = por %p355, %p356
      %s359 = sadd.s32 %s358, 1
      %p362 = scmp.eq.s32.totalorder %s30, 1
      %p363 = scmp.ne.s32.totalorder %s358, %s360
      %p364 = scmp.eq.s32.totalorder %s30, 0
      %p365 = por %p363, %p364
      %p366 = scmp.ne.s32.totalorder %s358, %s360
      %p367 = scmp.eq.s32.totalorder %s35, 1
      %p368 = por %p366, %p367
      %p369 = scmp.ne.s32.totalorder %s360, %s361
      %p370 = scmp.eq.s32.totalorder %s35, 0
      %p371 = por %p369, %p370
      %p372 = scmp.ne.s32.totalorder %s360, %s361
      %p373 = scmp.eq.s32.totalorder %s36, 1
      %p374 = por %p372, %p373
      %p376 = scmp.ne.s32.totalorder %s361, %s375
      %p377 = scmp.eq.s32.totalorder %s36, 0
      %p378 = por %p376, %p377
      %s379 = ssub.s32 %s30, %s37
      %p380 = scmp.eq.s32.totalorder %s379, 0
      %s382 = sadd.s32 %s381, 1
      %s383 = scalar_select %p380, %s381, %s382
      %p386 = pneg %p380
      %p387 = scmp.eq.s32.totalorder %s30, 1
      %p388 = por %p386, %p387
      %p389 = scmp.ne.s32.totalorder %s381, %s384
      %p390 = scmp.eq.s32.totalorder %s30, 0
      %p391 = por %p389, %p390
      %p392 = scmp.ne.s32.totalorder %s381, %s384
      %p393 = scmp.eq.s32.totalorder %s35, 1
      %p394 = por %p392, %p393
      %p395 = scmp.ne.s32.totalorder %s384, %s385
      %p396 = scmp.eq.s32.totalorder %s35, 0
      %p397 = por %p395, %p396
      %p398 = scmp.ne.s32.totalorder %s384, %s385
      %p399 = scmp.eq.s32.totalorder %s36, 1
      %p400 = por %p398, %p399
      %p402 = scmp.ne.s32.totalorder %s385, %s401
      %p403 = scmp.eq.s32.totalorder %s36, 0
      %p404 = por %p402, %p403
      %p405 = scmp.le.s32.totalorder 1, %s30
      %p406 = scmp.lt.s32.totalorder %s30, 3
      %p407 = pnand %p405, %p406
      %p408 = pneg %p407
      // Predicated region
      $region9: #{tpu_custom_call.1} parent=5 // pred_check
        _
      $region10: #{tpu_custom_call.1} parent=5 // pred_check_branch
        %410 = sbr.rel (%p407) target = $region12
      $region11: #{tpu_custom_call.1} parent=5 // pred_region
        %s411 = ssub.s32 %s30, 1
        // Predicated region
        $region13: #{tpu_custom_call.1} parent=11 // pred_check
          %p412 = pneg %p77
        $region14: #{tpu_custom_call.1} parent=11 // pred_check_branch
          %414 = sbr.rel (%p412) target = $region16
        $region15: #{tpu_custom_call.1} parent=11 // pred_region
          _
        $region16: #{tpu_custom_call.1} parent=11 // pred_fallthru
          _
        // Predicated region
        $region17: #{tpu_custom_call.1} parent=11 // pred_check
          %p415 = pneg %p98
        $region18: #{tpu_custom_call.1} parent=11 // pred_check_branch
          %417 = sbr.rel (%p415) target = $region20
        $region19: #{tpu_custom_call.1} parent=11 // pred_region
          _
        $region20: #{tpu_custom_call.1} parent=11 // pred_fallthru
          _
        // Predicated region
        $region21: #{tpu_custom_call.1} parent=11 // pred_check
          %p418 = pneg %p119
        $region22: #{tpu_custom_call.1} parent=11 // pred_check_branch
          %420 = sbr.rel (%p418) target = $region24
        $region23: #{tpu_custom_call.1} parent=11 // pred_region
          %s422 = ssub.s32 3072, 3072
          %423 = vsyncadd [#allocation6], %s422
          %s424 = sshll.u32 [#allocation5], 4
          %s425 = int_to_ptr.vmem [resolvable:$true] %s424
          %430 = dma.hbm_to_vmem [thread:$0]  %s3, 3072, %s425, [#allocation6], 192, 192, 12
        $region24: #{tpu_custom_call.1} parent=11 // pred_fallthru
          _
        // Predicated region
        $region25: #{tpu_custom_call.1} parent=11 // pred_check
          %p431 = pneg %p140
        $region26: #{tpu_custom_call.1} parent=11 // pred_check_branch
          %433 = sbr.rel (%p431) target = $region28
        $region27: #{tpu_custom_call.1} parent=11 // pred_region
          _
        $region28: #{tpu_custom_call.1} parent=11 // pred_fallthru
          _
        // Predicated region
        $region29: #{tpu_custom_call.1} parent=11 // pred_check
          %p434 = pneg %p161
        $region30: #{tpu_custom_call.1} parent=11 // pred_check_branch
          %436 = sbr.rel (%p434) target = $region32
        $region31: #{tpu_custom_call.1} parent=11 // pred_region
          _
        $region32: #{tpu_custom_call.1} parent=11 // pred_fallthru
          _
        // Predicated region
        $region33: #{tpu_custom_call.1} parent=11 // pred_check
          %p437 = pneg %p182
        $region34: #{tpu_custom_call.1} parent=11 // pred_check_branch
          %439 = sbr.rel (%p437) target = $region36
        $region35: #{tpu_custom_call.1} parent=11 // pred_region
          _
        $region36: #{tpu_custom_call.1} parent=11 // pred_fallthru
          _
        // Predicated region
        $region37: #{tpu_custom_call.1} parent=11 // pred_check
          %p440 = pneg %p203
        $region38: #{tpu_custom_call.1} parent=11 // pred_check_branch
          %442 = sbr.rel (%p440) target = $region40
        $region39: #{tpu_custom_call.1} parent=11 // pred_region
          %s444 = ssub.s32 1024, 1024
          %445 = vsyncadd [#allocation6], %s444
          %s446 = sshll.u32 [#allocation7], 4
          %s447 = int_to_ptr.vmem [resolvable:$true] %s446
          %452 = dma.hbm_to_vmem [thread:$0]  %s7, 1024, %s447, [#allocation6], 64, 64, 4
        $region40: #{tpu_custom_call.1} parent=11 // pred_fallthru
          _
        // Predicated region
        $region41: #{tpu_custom_call.1} parent=11 // pred_check
          %p453 = pneg %p224
        $region42: #{tpu_custom_call.1} parent=11 // pred_check_branch
          %455 = sbr.rel (%p453) target = $region44
        $region43: #{tpu_custom_call.1} parent=11 // pred_region
          _
        $region44: #{tpu_custom_call.1} parent=11 // pred_fallthru
          _
        // Predicated region
        $region45: #{tpu_custom_call.1} parent=11 // pred_check
          %p456 = pneg %p245
        $region46: #{tpu_custom_call.1} parent=11 // pred_check_branch
          %458 = sbr.rel (%p456) target = $region48
        $region47: #{tpu_custom_call.1} parent=11 // pred_region
          _
        $region48: #{tpu_custom_call.1} parent=11 // pred_fallthru
          _
        // Predicated region
        $region49: #{tpu_custom_call.1} parent=11 // pred_check
          %p459 = pneg %p266
        $region50: #{tpu_custom_call.1} parent=11 // pred_check_branch
          %461 = sbr.rel (%p459) target = $region52
        $region51: #{tpu_custom_call.1} parent=11 // pred_region
          _
        $region52: #{tpu_custom_call.1} parent=11 // pred_fallthru
          _
        // Predicated region
        $region53: #{tpu_custom_call.1} parent=11 // pred_check
          %p462 = pneg %p287
        $region54: #{tpu_custom_call.1} parent=11 // pred_check_branch
          %464 = sbr.rel (%p462) target = $region56
        $region55: #{tpu_custom_call.1} parent=11 // pred_region
          _
        $region56: #{tpu_custom_call.1} parent=11 // pred_fallthru
          _
        // Predicated region
        $region57: #{tpu_custom_call.1} parent=11 // pred_check
          %p465 = pneg %p308
        $region58: #{tpu_custom_call.1} parent=11 // pred_check_branch
          %467 = sbr.rel (%p465) target = $region60
        $region59: #{tpu_custom_call.1} parent=11 // pred_region
          %s469 = ssub.s32 2048, 2048
          %470 = vsyncadd [#allocation9], %s469
          %s471 = sshll.u32 [#allocation8], 4
          %s472 = int_to_ptr.vmem [resolvable:$true] %s471
          %477 = dma.hbm_to_vmem [thread:$0]  %s12, 2048, %s472, [#allocation9], 128, 128, 8
        $region60: #{tpu_custom_call.1} parent=11 // pred_fallthru
          _
        // Predicated region
        $region61: #{tpu_custom_call.1} parent=11 // pred_check
          %p478 = pneg %p329
        $region62: #{tpu_custom_call.1} parent=11 // pred_check_branch
          %480 = sbr.rel (%p478) target = $region64
        $region63: #{tpu_custom_call.1} parent=11 // pred_region
          _
        $region64: #{tpu_custom_call.1} parent=11 // pred_fallthru
          _
        // Predicated region
        $region65: #{tpu_custom_call.1} parent=11 // pred_check
          %p481 = pneg %p350
        $region66: #{tpu_custom_call.1} parent=11 // pred_check_branch
          %483 = sbr.rel (%p481) target = $region68
        $region67: #{tpu_custom_call.1} parent=11 // pred_region
          %s485 = ssub.s32 2048, 2048
          %486 = vsyncadd [#allocation9], %s485
          %s487 = sshll.u32 [#allocation10], 4
          %s488 = int_to_ptr.vmem [resolvable:$true] %s487
          %493 = dma.hbm_to_vmem [thread:$0]  %s14, 2048, %s488, [#allocation9], 64, 64, 4
        $region68: #{tpu_custom_call.1} parent=11 // pred_fallthru
          _
        // Predicated region
        $region69: #{tpu_custom_call.1} parent=11 // pred_check
          %p494 = pneg %p371
        $region70: #{tpu_custom_call.1} parent=11 // pred_check_branch
          %496 = sbr.rel (%p494) target = $region72
        $region71: #{tpu_custom_call.1} parent=11 // pred_region
          _
        $region72: #{tpu_custom_call.1} parent=11 // pred_fallthru
          _
      $region12: #{tpu_custom_call.1} parent=5 // pred_fallthru
        _
      %p497 = scmp.lt.s32.totalorder %s30, 2
      // Predicated region
      $region73: #{tpu_custom_call.1} parent=5 // pred_check
        %p498 = pneg %p497
      $region74: #{tpu_custom_call.1} parent=5 // pred_check_branch
        %500 = sbr.rel (%p498) target = $region76
      $region75: #{tpu_custom_call.1} parent=5 // pred_region
        // Predicated region
        $region77: #{tpu_custom_call.1} parent=75 // pred_check
          %p501 = pneg %p50
        $region78: #{tpu_custom_call.1} parent=75 // pred_check_branch
          %503 = sbr.rel (%p501) target = $region80
        $region79: #{tpu_custom_call.1} parent=75 // pred_region
          %s504 = sand.u32 %s40, 1
          %s505 = scalar_lea.sflag [#allocation3], %s504
          %s506 = sand.u32 %s40, 1
          %s507 = smul.addr %s506, 16
          %s508 = scalar_lea.vmem [#allocation2], %s507
          %s510 = ssub.s32 256, 256
          %511 = vsyncadd %s505, %s510
          %s512 = smul.addr %s30, 2
          %s513 = smul.addr %s512, 128
          %s514 = scalar_lea.hbm %s0, %s513
          %s515 = sshll.u32 %s508, 4
          %s516 = int_to_ptr.vmem [resolvable:$true] %s515
          %521 = dma.hbm_to_vmem [thread:$0]  %s514, 256, %s516, %s505, 128, 128, 8
        $region80: #{tpu_custom_call.1} parent=75 // pred_fallthru
          _
      $region76: #{tpu_custom_call.1} parent=5 // pred_fallthru
        _
      %p522 = scmp.le.s32.totalorder 1, %s30
      %p523 = scmp.lt.s32.totalorder %s30, 3
      %p524 = pnand %p522, %p523
      %p525 = pneg %p524
      // Predicated region
      $region81: #{tpu_custom_call.1} parent=5 // pred_check
        _
      $region82: #{tpu_custom_call.1} parent=5 // pred_check_branch
        %527 = sbr.rel (%p524) target = $region84
      $region83: #{tpu_custom_call.1} parent=5 // pred_region
        %s528 = ssub.s32 %s30, 1
        %s529 = sand.u32 %s43, 1
        %s530 = scalar_lea.sflag [#allocation3], %s529
        %s531 = sand.u32 %s43, 1
        %s532 = smul.addr %s531, 16
        %s533 = scalar_lea.vmem [#allocation2], %s532
        // Predicated region
        $region85: #{tpu_custom_call.1} parent=83 // pred_check
          %p534 = pneg %p56
        $region86: #{tpu_custom_call.1} parent=83 // pred_check_branch
          %536 = sbr.rel (%p534) target = $region88
        $region87: #{tpu_custom_call.1} parent=83 // pred_region
          %537 = dma.done %s530, 256
        $region88: #{tpu_custom_call.1} parent=83 // pred_fallthru
          _
        // Predicated region
        $region89: #{tpu_custom_call.1} parent=83 // pred_check
          %p538 = pneg %p119
        $region90: #{tpu_custom_call.1} parent=83 // pred_check_branch
          %540 = sbr.rel (%p538) target = $region92
        $region91: #{tpu_custom_call.1} parent=83 // pred_region
          %541 = dma.done [#allocation6], 3072
        $region92: #{tpu_custom_call.1} parent=83 // pred_fallthru
          _
        // Predicated region
        $region93: #{tpu_custom_call.1} parent=83 // pred_check
          %p542 = pneg %p203
        $region94: #{tpu_custom_call.1} parent=83 // pred_check_branch
          %544 = sbr.rel (%p542) target = $region96
        $region95: #{tpu_custom_call.1} parent=83 // pred_region
          %545 = dma.done [#allocation6], 1024
        $region96: #{tpu_custom_call.1} parent=83 // pred_fallthru
          _
        // Predicated region
        $region97: #{tpu_custom_call.1} parent=83 // pred_check
          %p546 = pneg %p308
        $region98: #{tpu_custom_call.1} parent=83 // pred_check_branch
          %548 = sbr.rel (%p546) target = $region100
        $region99: #{tpu_custom_call.1} parent=83 // pred_region
          %549 = dma.done [#allocation9], 2048
        $region100: #{tpu_custom_call.1} parent=83 // pred_fallthru
          _
        // Predicated region
        $region101: #{tpu_custom_call.1} parent=83 // pred_check
          %p550 = pneg %p350
        $region102: #{tpu_custom_call.1} parent=83 // pred_check_branch
          %552 = sbr.rel (%p550) target = $region104
        $region103: #{tpu_custom_call.1} parent=83 // pred_region
          %553 = dma.done [#allocation9], 2048
        $region104: #{tpu_custom_call.1} parent=83 // pred_fallthru
          _
        %s554 = sand.u32 %s43, 1
        %s555 = scalar_lea.sflag [#allocation3], %s554
        %s556 = sand.u32 %s43, 1
        %s557 = smul.addr %s556, 16
        %s558 = scalar_lea.vmem [#allocation2], %s557
        %p559 = pneg %p56
        %p560 = pneg %p53
        %p561 = pneg %p77
        %p562 = pneg %p74
        %p563 = pneg %p98
        %p564 = pneg %p95
        %p565 = pneg %p119
        %p566 = pneg %p116
        %p567 = pneg %p140
        %p568 = pneg %p137
        %p569 = pneg %p161
        %p570 = pneg %p158
        %p571 = pneg %p182
        %p572 = pneg %p179
        %p573 = pneg %p203
        %p574 = pneg %p200
        %p575 = pneg %p224
        %p576 = pneg %p221
        %p577 = pneg %p245
        %p578 = pneg %p242
        %p579 = pneg %p266
        %p580 = pneg %p263
        %p581 = pneg %p287
        %p582 = pneg %p284
        %p583 = pneg %p308
        %p584 = pneg %p305
        %p585 = pneg %p329
        %p586 = pneg %p326
        %p587 = pneg %p350
        %p588 = pneg %p347
        %p589 = pneg %p371
        %p590 = pneg %p368
        %p591 = pneg %p397
        %p592 = pneg %p394
        %s593 = sand.u32 %s384, 1
        %s594 = scalar_lea.sflag [#allocation4], %s593
        %s595 = sand.u32 %s384, 1
        %s596 = smul.addr %s595, 16
        %s597 = scalar_lea.vmem [#allocation11], %s596
        %v599 = vld [vmem:[%s533] sm:$0xff]
        %v600 = vld [vmem:[%s533 + $0x8] sm:$0xff]
        %v601 = vld [vmem:[%s1] sm:$0x1]
        %v602 = vld [vmem:[%s2] sm:$0x1]
        %603 = vadd.xlane.f32.xlu0 %v599
        %v604 = vpop.xlane.xlu0 %603
        %605 = vadd.xlane.f32.xlu0 %v600
        %v606 = vpop.xlane.xlu0 %605
        %v607 = vrcp.pop 128.0
        %v608 = vmul.f32 %v604, %v607
        %v609 = vmul.f32 %v606, %v607
        %v610 = vsub.f32 %v599, %v608
        %v611 = vsub.f32 %v600, %v609
        %v612 = vmul.f32 %v610, %v610
        %v613 = vmul.f32 %v611, %v611
        %614 = vadd.xlane.f32.xlu0 %v612
        %v615 = vpop.xlane.xlu0 %614
        %616 = vadd.xlane.f32.xlu0 %v613
        %v617 = vpop.xlane.xlu0 %616
        %v618 = vmul.f32 %v615, %v607
        %v619 = vmul.f32 %v617, %v607
        %v620 = vadd.f32 %v618, 1e-06
        %v621 = vadd.f32 %v619, 1e-06
        %v622 = vrsqrt.pop %v620
        %v623 = vrsqrt.pop %v621
        %v624 = vmul.f32 %v610, %v622
        %v625 = vmul.f32 %v611, %v623
        %v627 = vlaneseq
        %v628 = vshrl.u32 %v627, 7
        %v629 = vsub.s32 0, %v628
        %v630 = vrot.slane %v601, %v629
        %v632 = vmul.f32 %v624, %v630
        %v633 = vmul.f32 %v625, %v630
        %v635 = vlaneseq
        %v636 = vshrl.u32 %v635, 7
        %v637 = vsub.s32 0, %v636
        %v638 = vrot.slane %v602, %v637
        %v640 = vadd.f32 %v632, %v638
        %v641 = vadd.f32 %v633, %v638
        %v642 = vpack.c.bf16 %v641, %v640
        %v643 = vld [vmem:[#allocation5] sm:$0xff]
        %v644 = vld [vmem:[#allocation5 + $0x8] sm:$0xf]
        %v645 = vld [vmem:[#allocation5 + $0xc] sm:$0xff]
        %v646 = vld [vmem:[#allocation5 + $0x14] sm:$0xf]
        %v647 = vld [vmem:[#allocation5 + $0x18] sm:$0xff]
        %v648 = vld [vmem:[#allocation5 + $0x20] sm:$0xf]
        %v649 = vld [vmem:[#allocation5 + $0x24] sm:$0xff]
        %v650 = vld [vmem:[#allocation5 + $0x2c] sm:$0xf]
        %v651 = vld [vmem:[#allocation5 + $0x30] sm:$0xff]
        %v652 = vld [vmem:[#allocation5 + $0x38] sm:$0xf]
        %v653 = vld [vmem:[#allocation5 + $0x3c] sm:$0xff]
        %v654 = vld [vmem:[#allocation5 + $0x44] sm:$0xf]
        %v655 = vld [vmem:[#allocation5 + $0x48] sm:$0xff]
        %v656 = vld [vmem:[#allocation5 + $0x50] sm:$0xf]
        %v657 = vld [vmem:[#allocation5 + $0x54] sm:$0xff]
        %v658 = vld [vmem:[#allocation5 + $0x5c] sm:$0xf]
        %v659 = vld [vmem:[#allocation5 + $0x60] sm:$0xff]
        %v660 = vld [vmem:[#allocation5 + $0x68] sm:$0xf]
        %v661 = vld [vmem:[#allocation5 + $0x6c] sm:$0xff]
        %v662 = vld [vmem:[#allocation5 + $0x74] sm:$0xf]
        %v663 = vld [vmem:[#allocation5 + $0x78] sm:$0xff]
        %v664 = vld [vmem:[#allocation5 + $0x80] sm:$0xf]
        %v665 = vld [vmem:[#allocation5 + $0x84] sm:$0xff]
        %v666 = vld [vmem:[#allocation5 + $0x8c] sm:$0xf]
        %v667 = vld [vmem:[#allocation5 + $0x90] sm:$0xff]
        %v668 = vld [vmem:[#allocation5 + $0x98] sm:$0xf]
        %v669 = vld [vmem:[#allocation5 + $0x9c] sm:$0xff]
        %v670 = vld [vmem:[#allocation5 + $0xa4] sm:$0xf]
        %v671 = vld [vmem:[#allocation5 + $0xa8] sm:$0xff]
        %v672 = vld [vmem:[#allocation5 + $0xb0] sm:$0xf]
        %v673 = vld [vmem:[#allocation5 + $0xb4] sm:$0xff]
        %v674 = vld [vmem:[#allocation5 + $0xbc] sm:$0xf]
        %v675 = vld [vmem:[%s4] sm:$0x7]
        %v677 = vlaneseq
        %v678 = vshrl.u32 %v677, 7
        %v679 = vsub.s32 0, %v678
        %v680 = vrot.slane %v675, %v679
        %v681 = vlaneseq
        %v682 = vshrl.u32 %v681, 7
        %v683 = vsub.s32 1, %v682
        %v684 = vrot.slane %v675, %v683
        %v685 = vlaneseq
        %v686 = vshrl.u32 %v685, 7
        %v687 = vsub.s32 2, %v686
        %v688 = vrot.slane %v675, %v687
        %v724 = vunpack.c.l.b16 %v643
        %v725 = vunpack.c.h.b16 %v643
        %v726 = vunpack.c.l.b16 %v644
        %v727 = vunpack.c.l.b16 %v645
        %v728 = vunpack.c.h.b16 %v645
        %v729 = vunpack.c.l.b16 %v646
        %v730 = vunpack.c.l.b16 %v647
        %v731 = vunpack.c.h.b16 %v647
        %v732 = vunpack.c.l.b16 %v648
        %v733 = vunpack.c.l.b16 %v649
        %v734 = vunpack.c.h.b16 %v649
        %v735 = vunpack.c.l.b16 %v650
        %v736 = vunpack.c.l.b16 %v651
        %v737 = vunpack.c.h.b16 %v651
        %v738 = vunpack.c.l.b16 %v652
        %v739 = vunpack.c.l.b16 %v653
        %v740 = vunpack.c.h.b16 %v653
        %v741 = vunpack.c.l.b16 %v654
        %v742 = vunpack.c.l.b16 %v655
        %v743 = vunpack.c.h.b16 %v655
        %v744 = vunpack.c.l.b16 %v656
        %v745 = vunpack.c.l.b16 %v657
        %v746 = vunpack.c.h.b16 %v657
        %v747 = vunpack.c.l.b16 %v658
        %v748 = vunpack.c.l.b16 %v659
        %v749 = vunpack.c.h.b16 %v659
        %v750 = vunpack.c.l.b16 %v660
        %v751 = vunpack.c.l.b16 %v661
        %v752 = vunpack.c.h.b16 %v661
        %v753 = vunpack.c.l.b16 %v662
        %v754 = vunpack.c.l.b16 %v663
        %v755 = vunpack.c.h.b16 %v663
        %v756 = vunpack.c.l.b16 %v664
        %v757 = vunpack.c.l.b16 %v665
        %v758 = vunpack.c.h.b16 %v665
        %v759 = vunpack.c.l.b16 %v666
        %v760 = vunpack.c.l.b16 %v667
        %v761 = vunpack.c.h.b16 %v667
        %v762 = vunpack.c.l.b16 %v668
        %v763 = vunpack.c.l.b16 %v669
        %v764 = vunpack.c.h.b16 %v669
        %v765 = vunpack.c.l.b16 %v670
        %v766 = vunpack.c.l.b16 %v671
        %v767 = vunpack.c.h.b16 %v671
        %v768 = vunpack.c.l.b16 %v672
        %v769 = vunpack.c.l.b16 %v673
        %v770 = vunpack.c.h.b16 %v673
        %v771 = vunpack.c.l.b16 %v674
        %v772 = vpack.c.b16 %v727, %v724
        %v773 = vpack.c.b16 %v728, %v725
        %v774 = vpack.c.b16 %v729, %v726
        %v775 = vpack.c.b16 %v733, %v730
        %v776 = vpack.c.b16 %v734, %v731
        %v777 = vpack.c.b16 %v735, %v732
        %v778 = vpack.c.b16 %v739, %v736
        %v779 = vpack.c.b16 %v740, %v737
        %v780 = vpack.c.b16 %v741, %v738
        %v781 = vpack.c.b16 %v745, %v742
        %v782 = vpack.c.b16 %v746, %v743
        %v783 = vpack.c.b16 %v747, %v744
        %v784 = vpack.c.b16 %v751, %v748
        %v785 = vpack.c.b16 %v752, %v749
        %v786 = vpack.c.b16 %v753, %v750
        %v787 = vpack.c.b16 %v757, %v754
        %v788 = vpack.c.b16 %v758, %v755
        %v789 = vpack.c.b16 %v759, %v756
        %v790 = vpack.c.b16 %v763, %v760
        %v791 = vpack.c.b16 %v764, %v761
        %v792 = vpack.c.b16 %v765, %v762
        %v793 = vpack.c.b16 %v769, %v766
        %v794 = vpack.c.b16 %v770, %v767
        %v795 = vpack.c.b16 %v771, %v768
        %820 = vmatprep.subr.bf16.mxu0 %v773
        %821 = vmatpush1.bf16.msra.mxu0 %v772
        %822 = vmatprep.subr.bf16.mxu0 %v776
        %823 = vmatpush1.bf16.msra.mxu0 %v775
        %824 = vmatprep.subr.bf16.mxu0 %v779
        %825 = vmatpush1.bf16.msra.mxu0 %v778
        %826 = vmatprep.subr.bf16.mxu0 %v782
        %827 = vmatpush1.bf16.msra.mxu0 %v781
        %828 = vmatprep.subr.bf16.mxu0 %v785
        %829 = vmatpush1.bf16.msra.mxu0 %v784
        %830 = vmatprep.subr.bf16.mxu0 %v788
        %831 = vmatpush1.bf16.msra.mxu0 %v787
        %832 = vmatprep.subr.bf16.mxu0 %v791
        %833 = vmatpush1.bf16.msra.mxu0 %v790
        %834 = vmatprep.subr.bf16.mxu0 %v794
        %835 = vmatpush1.bf16.msra.mxu0 %v793
        %836 = vmatprep.subr.bf16.mxu0 0
        %837 = vmatpush1.bf16.msra.mxu0 0
        %838 = vmatprep.subr.bf16.mxu0 0
        %839 = vmatpush1.bf16.msra.mxu0 0
        %840 = vmatprep.subr.bf16.mxu0 0
        %841 = vmatpush1.bf16.msra.mxu0 0
        %842 = vmatprep.subr.bf16.mxu0 0
        %843 = vmatpush1.bf16.msra.mxu0 0
        %844 = vmatprep.subr.bf16.mxu0 0
        %845 = vmatpush1.bf16.msra.mxu0 0
        %846 = vmatprep.subr.bf16.mxu0 0
        %847 = vmatpush1.bf16.msra.mxu0 0
        %848 = vmatprep.subr.bf16.mxu0 0
        %849 = vmatpush1.bf16.msra.mxu0 0
        %850 = vmatprep.subr.bf16.mxu0 0
        %851 = vmatpush1.bf16.msra.mxu0 0
        %852 = vmatprep.mubr.bf16.mxu0 0
        %853 = vmatmul.mubr.bf16.gmra.mrb[0].mxu0 %v642
        %v854 = vpop.f32.mrb[0].mxu0
        %v855 = vadd.f32 %v680, %v854
        %v856 = vpop.f32.mrb[0].mxu0
        %v857 = vadd.f32 %v684, %v856
        %v858 = vpop.f32.mrb[0].mxu0
        %v859 = vadd.f32 %v680, %v858
        %v860 = vpop.f32.mrb[0].mxu0
        %v861 = vadd.f32 %v684, %v860
        %862 = vdwg.mxu0
        %863 = vmatprep.subr.bf16.mxu0 0
        %864 = vmatpush1.bf16.msra.mxu0 %v774
        %865 = vmatprep.subr.bf16.mxu0 0
        %866 = vmatpush1.bf16.msra.mxu0 %v777
        %867 = vmatprep.subr.bf16.mxu0 0
        %868 = vmatpush1.bf16.msra.mxu0 %v780
        %869 = vmatprep.subr.bf16.mxu0 0
        %870 = vmatpush1.bf16.msra.mxu0 %v783
        %871 = vmatprep.subr.bf16.mxu0 0
        %872 = vmatpush1.bf16.msra.mxu0 %v786
        %873 = vmatprep.subr.bf16.mxu0 0
        %874 = vmatpush1.bf16.msra.mxu0 %v789
        %875 = vmatprep.subr.bf16.mxu0 0
        %876 = vmatpush1.bf16.msra.mxu0 %v792
        %877 = vmatprep.subr.bf16.mxu0 0
        %878 = vmatpush1.bf16.msra.mxu0 %v795
        %879 = vmatprep.subr.bf16.mxu0 0
        %880 = vmatpush1.bf16.msra.mxu0 0
        %881 = vmatprep.subr.bf16.mxu0 0
        %882 = vmatpush1.bf16.msra.mxu0 0
        %883 = vmatprep.subr.bf16.mxu0 0
        %884 = vmatpush1.bf16.msra.mxu0 0
        %885 = vmatprep.subr.bf16.mxu0 0
        %886 = vmatpush1.bf16.msra.mxu0 0
        %887 = vmatprep.subr.bf16.mxu0 0
        %888 = vmatpush1.bf16.msra.mxu0 0
        %889 = vmatprep.subr.bf16.mxu0 0
        %890 = vmatpush1.bf16.msra.mxu0 0
        %891 = vmatprep.subr.bf16.mxu0 0
        %892 = vmatpush1.bf16.msra.mxu0 0
        %893 = vmatprep.subr.bf16.mxu0 0
        %894 = vmatpush1.bf16.msra.mxu0 0
        %895 = vmatprep.mubr.bf16.mxu0 0
        %896 = vmatmul.mubr.bf16.gmra.mrb[0].mxu0 %v642
        %v897 = vpop.f32.mrb[0].mxu0
        %v898 = vadd.f32 %v688, %v897
        %v899 = vpop.f32.mrb[0].mxu0
        %v900 = vpop.f32.mrb[0].mxu0
        %v901 = vadd.f32 %v688, %v900
        %v902 = vpop.f32.mrb[0].mxu0
        %903 = vdwg.mxu0
        %v904 = vld [vmem:[%s5] sm:$0x1]
        %v905 = vmul.f32 %v855, %v855
        %v906 = vmul.f32 %v859, %v859
        %907 = vadd.xlane.f32.xlu0 %v905
        %v908 = vpop.xlane.xlu0 %907
        %909 = vadd.xlane.f32.xlu0 %v906
        %v910 = vpop.xlane.xlu0 %909
        %v911 = vmax.f32 %v908, 1e-24
        %v912 = vmax.f32 %v910, 1e-24
        %v913 = vrsqrt.pop %v911
        %v914 = vrsqrt.pop %v912
        %v915 = vmul.f32 %v855, %v913
        %v916 = vmul.f32 %v859, %v914
        %v918 = vlaneseq
        %v919 = vshrl.u32 %v918, 7
        %v920 = vsub.s32 0, %v919
        %v921 = vrot.slane %v904, %v920
        %v923 = vmul.f32 %v915, %v921
        %v924 = vmul.f32 %v916, %v921
        %v925 = vld [vmem:[%s6] sm:$0x1]
        %v926 = vmul.f32 %v857, %v857
        %v927 = vmul.f32 %v861, %v861
        %928 = vadd.xlane.f32.xlu0 %v926
        %v929 = vpop.xlane.xlu0 %928
        %930 = vadd.xlane.f32.xlu0 %v927
        %v931 = vpop.xlane.xlu0 %930
        %v932 = vmax.f32 %v929, 1e-24
        %v933 = vmax.f32 %v931, 1e-24
        %v934 = vrsqrt.pop %v932
        %v935 = vrsqrt.pop %v933
        %v936 = vmul.f32 %v857, %v934
        %v937 = vmul.f32 %v861, %v935
        %v939 = vlaneseq
        %v940 = vshrl.u32 %v939, 7
        %v941 = vsub.s32 0, %v940
        %v942 = vrot.slane %v925, %v941
        %v944 = vmul.f32 %v936, %v942
        %v945 = vmul.f32 %v937, %v942
        %948 = vrot.lane.b32.xlu0 %v923, 96
        %v949 = vpop.permute.xlu0 %948
        %950 = vrot.lane.b32.xlu0 %v924, 96
        %v951 = vpop.permute.xlu0 %950
        %954 = vrot.lane.b32.xlu0 %v923, 64
        %v955 = vpop.permute.xlu0 %954
        %956 = vrot.lane.b32.xlu0 %v924, 64
        %v957 = vpop.permute.xlu0 %956
        %960 = vrot.lane.b32.xlu0 %v923, 32
        %v961 = vpop.permute.xlu0 %960
        %962 = vrot.lane.b32.xlu0 %v924, 32
        %v963 = vpop.permute.xlu0 %962
        %v966 = vpack.c.bf16 %v924, %v923
        %v967 = vpack.c.bf16 %v951, %v949
        %v968 = vpack.c.bf16 %v957, %v955
        %v969 = vpack.c.bf16 %v963, %v961
        %972 = vrot.lane.b32.xlu0 %v944, 96
        %v973 = vpop.permute.xlu0 %972
        %974 = vrot.lane.b32.xlu0 %v945, 96
        %v975 = vpop.permute.xlu0 %974
        %978 = vrot.lane.b32.xlu0 %v944, 64
        %v979 = vpop.permute.xlu0 %978
        %980 = vrot.lane.b32.xlu0 %v945, 64
        %v981 = vpop.permute.xlu0 %980
        %984 = vrot.lane.b32.xlu0 %v944, 32
        %v985 = vpop.permute.xlu0 %984
        %986 = vrot.lane.b32.xlu0 %v945, 32
        %v987 = vpop.permute.xlu0 %986
        %v990 = vpack.c.bf16 %v945, %v944
        %v991 = vpack.c.bf16 %v975, %v973
        %v992 = vpack.c.bf16 %v981, %v979
        %v993 = vpack.c.bf16 %v987, %v985
        %996 = vrot.lane.b32.xlu0 %v898, 96
        %v997 = vpop.permute.xlu0 %996
        %998 = vrot.lane.b32.xlu0 %v901, 96
        %v999 = vpop.permute.xlu0 %998
        %1002 = vrot.lane.b32.xlu0 %v898, 64
        %v1003 = vpop.permute.xlu0 %1002
        %1004 = vrot.lane.b32.xlu0 %v901, 64
        %v1005 = vpop.permute.xlu0 %1004
        %1008 = vrot.lane.b32.xlu0 %v898, 32
        %v1009 = vpop.permute.xlu0 %1008
        %1010 = vrot.lane.b32.xlu0 %v901, 32
        %v1011 = vpop.permute.xlu0 %1010
        %v1014 = vpack.c.bf16 %v901, %v898
        %v1015 = vpack.c.bf16 %v999, %v997
        %v1016 = vpack.c.bf16 %v1005, %v1003
        %v1017 = vpack.c.bf16 %v1011, %v1009
        %vm1018 = vcmask 261120
        %v1020 = vsel %vm1018, %v966, 0
        %v1023 = vsel %vm1018, %v990, 0
        %1025 = vmatprep.subr.bf16.mxu0 0
        %1026 = vmatpush1.bf16.xpose.msra.mxu0 %v1023
        %1027 = vmatprep.subr.bf16.mxu0 0
        %1028 = vmatpush1.bf16.xpose.msra.mxu0 0
        %1029 = vmatprep.subr.bf16.mxu0 0
        %1030 = vmatpush1.bf16.xpose.msra.mxu0 0
        %1031 = vmatprep.subr.bf16.mxu0 0
        %1032 = vmatpush1.bf16.xpose.msra.mxu0 0
        %1033 = vmatprep.subr.bf16.mxu0 0
        %1034 = vmatpush1.bf16.xpose.msra.mxu0 0
        %1035 = vmatprep.subr.bf16.mxu0 0
        %1036 = vmatpush1.bf16.xpose.msra.mxu0 0
        %1037 = vmatprep.subr.bf16.mxu0 0
        %1038 = vmatpush1.bf16.xpose.msra.mxu0 0
        %1039 = vmatprep.subr.bf16.mxu0 0
        %1040 = vmatpush1.bf16.xpose.msra.mxu0 0
        %1041 = vmatprep.subr.bf16.mxu0 0
        %1042 = vmatpush1.bf16.xpose.msra.mxu0 0
        %1043 = vmatprep.subr.bf16.mxu0 0
        %1044 = vmatpush1.bf16.xpose.msra.mxu0 0
        %1045 = vmatprep.subr.bf16.mxu0 0
        %1046 = vmatpush1.bf16.xpose.msra.mxu0 0
        %1047 = vmatprep.subr.bf16.mxu0 0
        %1048 = vmatpush1.bf16.xpose.msra.mxu0 0
        %1049 = vmatprep.subr.bf16.mxu0 0
        %1050 = vmatpush1.bf16.xpose.msra.mxu0 0
        %1051 = vmatprep.subr.bf16.mxu0 0
        %1052 = vmatpush1.bf16.xpose.msra.mxu0 0
        %1053 = vmatprep.subr.bf16.mxu0 0
        %1054 = vmatpush1.bf16.xpose.msra.mxu0 0
        %1055 = vmatprep.subr.bf16.mxu0 0
        %1056 = vmatpush1.bf16.xpose.msra.mxu0 0
        %1057 = vmatprep.mubr.bf16.mxu0 0
        %1058 = vmatmul.mubr.bf16.gmra.mrb[0].mxu0 %v1020
        %v1059 = vpop.f32.mrb[0].mxu0
        %v1060 = vadd.f32 0.0, %v1059
        %v1061 = vpop.f32.mrb[0].mxu0
        %v1062 = vpop.f32.mrb[0].mxu0
        %v1063 = vadd.f32 0.0, %v1062
        %v1064 = vpop.f32.mrb[0].mxu0
        %1065 = vdwg.mxu0
        %v1067 = vsel %vm1018, %v967, 0
        %v1070 = vsel %vm1018, %v991, 0
        %1072 = vmatprep.subr.bf16.mxu0 0
        %1073 = vmatpush1.bf16.xpose.msra.mxu0 %v1070
        %1074 = vmatprep.subr.bf16.mxu0 0
        %1075 = vmatpush1.bf16.xpose.msra.mxu0 0
        %1076 = vmatprep.subr.bf16.mxu0 0
        %1077 = vmatpush1.bf16.xpose.msra.mxu0 0
        %1078 = vmatprep.subr.bf16.mxu0 0
        %1079 = vmatpush1.bf16.xpose.msra.mxu0 0
        %1080 = vmatprep.subr.bf16.mxu0 0
        %1081 = vmatpush1.bf16.xpose.msra.mxu0 0
        %1082 = vmatprep.subr.bf16.mxu0 0
        %1083 = vmatpush1.bf16.xpose.msra.mxu0 0
        %1084 = vmatprep.subr.bf16.mxu0 0
        %1085 = vmatpush1.bf16.xpose.msra.mxu0 0
        %1086 = vmatprep.subr.bf16.mxu0 0
        %1087 = vmatpush1.bf16.xpose.msra.mxu0 0
        %1088 = vmatprep.subr.bf16.mxu0 0
        %1089 = vmatpush1.bf16.xpose.msra.mxu0 0
        %1090 = vmatprep.subr.bf16.mxu0 0
        %1091 = vmatpush1.bf16.xpose.msra.mxu0 0
        %1092 = vmatprep.subr.bf16.mxu0 0
        %1093 = vmatpush1.bf16.xpose.msra.mxu0 0
        %1094 = vmatprep.subr.bf16.mxu0 0
        %1095 = vmatpush1.bf16.xpose.msra.mxu0 0
        %1096 = vmatprep.subr.bf16.mxu0 0
        %1097 = vmatpush1.bf16.xpose.msra.mxu0 0
        %1098 = vmatprep.subr.bf16.mxu0 0
        %1099 = vmatpush1.bf16.xpose.msra.mxu0 0
        %1100 = vmatprep.subr.bf16.mxu0 0
        %1101 = vmatpush1.bf16.xpose.msra.mxu0 0
        %1102 = vmatprep.subr.bf16.mxu0 0
        %1103 = vmatpush1.bf16.xpose.msra.mxu0 0
        %1104 = vmatprep.mubr.bf16.mxu0 0
        %1105 = vmatmul.mubr.bf16.gmra.mrb[0].mxu0 %v1067
        %v1106 = vpop.f32.mrb[0].mxu0
        %v1107 = vadd.f32 0.0, %v1106
        %v1108 = vpop.f32.mrb[0].mxu0
        %v1109 = vpop.f32.mrb[0].mxu0
        %v1110 = vadd.f32 0.0, %v1109
        %v1111 = vpop.f32.mrb[0].mxu0
        %1112 = vdwg.mxu0
        %v1114 = vsel %vm1018, %v968, 0
        %v1117 = vsel %vm1018, %v992, 0
        %1119 = vmatprep.subr.bf16.mxu0 0
        %1120 = vmatpush1.bf16.xpose.msra.mxu0 %v1117
        %1121 = vmatprep.subr.bf16.mxu0 0
        %1122 = vmatpush1.bf16.xpose.msra.mxu0 0
        %1123 = vmatprep.subr.bf16.mxu0 0
        %1124 = vmatpush1.bf16.xpose.msra.mxu0 0
        %1125 = vmatprep.subr.bf16.mxu0 0
        %1126 = vmatpush1.bf16.xpose.msra.mxu0 0
        %1127 = vmatprep.subr.bf16.mxu0 0
        %1128 = vmatpush1.bf16.xpose.msra.mxu0 0
        %1129 = vmatprep.subr.bf16.mxu0 0
        %1130 = vmatpush1.bf16.xpose.msra.mxu0 0
        %1131 = vmatprep.subr.bf16.mxu0 0
        %1132 = vmatpush1.bf16.xpose.msra.mxu0 0
        %1133 = vmatprep.subr.bf16.mxu0 0
        %1134 = vmatpush1.bf16.xpose.msra.mxu0 0
        %1135 = vmatprep.subr.bf16.mxu0 0
        %1136 = vmatpush1.bf16.xpose.msra.mxu0 0
        %1137 = vmatprep.subr.bf16.mxu0 0
        %1138 = vmatpush1.bf16.xpose.msra.mxu0 0
        %1139 = vmatprep.subr.bf16.mxu0 0
        %1140 = vmatpush1.bf16.xpose.msra.mxu0 0
        %1141 = vmatprep.subr.bf16.mxu0 0
        %1142 = vmatpush1.bf16.xpose.msra.mxu0 0
        %1143 = vmatprep.subr.bf16.mxu0 0
        %1144 = vmatpush1.bf16.xpose.msra.mxu0 0
        %1145 = vmatprep.subr.bf16.mxu0 0
        %1146 = vmatpush1.bf16.xpose.msra.mxu0 0
        %1147 = vmatprep.subr.bf16.mxu0 0
        %1148 = vmatpush1.bf16.xpose.msra.mxu0 0
        %1149 = vmatprep.subr.bf16.mxu0 0
        %1150 = vmatpush1.bf16.xpose.msra.mxu0 0
        %1151 = vmatprep.mubr.bf16.mxu0 0
        %1152 = vmatmul.mubr.bf16.gmra.mrb[0].mxu0 %v1114
        %v1153 = vpop.f32.mrb[0].mxu0
        %v1154 = vadd.f32 0.0, %v1153
        %v1155 = vpop.f32.mrb[0].mxu0
        %v1156 = vpop.f32.mrb[0].mxu0
        %v1157 = vadd.f32 0.0, %v1156
        %v1158 = vpop.f32.mrb[0].mxu0
        %1159 = vdwg.mxu0
        %v1161 = vsel %vm1018, %v969, 0
        %v1164 = vsel %vm1018, %v993, 0
        %1166 = vmatprep.subr.bf16.mxu0 0
        %1167 = vmatpush1.bf16.xpose.msra.mxu0 %v1164
        %1168 = vmatprep.subr.bf16.mxu0 0
        %1169 = vmatpush1.bf16.xpose.msra.mxu0 0
        %1170 = vmatprep.subr.bf16.mxu0 0
        %1171 = vmatpush1.bf16.xpose.msra.mxu0 0
        %1172 = vmatprep.subr.bf16.mxu0 0
        %1173 = vmatpush1.bf16.xpose.msra.mxu0 0
        %1174 = vmatprep.subr.bf16.mxu0 0
        %1175 = vmatpush1.bf16.xpose.msra.mxu0 0
        %1176 = vmatprep.subr.bf16.mxu0 0
        %1177 = vmatpush1.bf16.xpose.msra.mxu0 0
        %1178 = vmatprep.subr.bf16.mxu0 0
        %1179 = vmatpush1.bf16.xpose.msra.mxu0 0
        %1180 = vmatprep.subr.bf16.mxu0 0
        %1181 = vmatpush1.bf16.xpose.msra.mxu0 0
        %1182 = vmatprep.subr.bf16.mxu0 0
        %1183 = vmatpush1.bf16.xpose.msra.mxu0 0
        %1184 = vmatprep.subr.bf16.mxu0 0
        %1185 = vmatpush1.bf16.xpose.msra.mxu0 0
        %1186 = vmatprep.subr.bf16.mxu0 0
        %1187 = vmatpush1.bf16.xpose.msra.mxu0 0
        %1188 = vmatprep.subr.bf16.mxu0 0
        %1189 = vmatpush1.bf16.xpose.msra.mxu0 0
        %1190 = vmatprep.subr.bf16.mxu0 0
        %1191 = vmatpush1.bf16.xpose.msra.mxu0 0
        %1192 = vmatprep.subr.bf16.mxu0 0
        %1193 = vmatpush1.bf16.xpose.msra.mxu0 0
        %1194 = vmatprep.subr.bf16.mxu0 0
        %1195 = vmatpush1.bf16.xpose.msra.mxu0 0
        %1196 = vmatprep.subr.bf16.mxu0 0
        %1197 = vmatpush1.bf16.xpose.msra.mxu0 0
        %1198 = vmatprep.mubr.bf16.mxu0 0
        %1199 = vmatmul.mubr.bf16.gmra.mrb[0].mxu0 %v1161
        %v1200 = vpop.f32.mrb[0].mxu0
        %v1201 = vadd.f32 0.0, %v1200
        %v1202 = vpop.f32.mrb[0].mxu0
        %v1203 = vpop.f32.mrb[0].mxu0
        %v1204 = vadd.f32 0.0, %v1203
        %v1205 = vpop.f32.mrb[0].mxu0
        %1206 = vdwg.mxu0
        %vm1207 = vcmask 130048
        %v1208 = vsel %vm1207, %v1060, -inf
        %1209 = vmax.xlane.f32.xlu0 %v1208
        %v1210 = vpop.xlane.xlu0 %1209
        %v1211 = vsel %vm1207, %v1063, -inf
        %1212 = vmax.xlane.f32.xlu0 %v1211
        %v1213 = vpop.xlane.xlu0 %1212
        %v1214 = vsel %vm1207, %v1107, -inf
        %1215 = vmax.xlane.f32.xlu0 %v1214
        %v1216 = vpop.xlane.xlu0 %1215
        %v1217 = vsel %vm1207, %v1110, -inf
        %1218 = vmax.xlane.f32.xlu0 %v1217
        %v1219 = vpop.xlane.xlu0 %1218
        %v1220 = vsel %vm1207, %v1154, -inf
        %1221 = vmax.xlane.f32.xlu0 %v1220
        %v1222 = vpop.xlane.xlu0 %1221
        %v1223 = vsel %vm1207, %v1157, -inf
        %1224 = vmax.xlane.f32.xlu0 %v1223
        %v1225 = vpop.xlane.xlu0 %1224
        %v1226 = vsel %vm1207, %v1201, -inf
        %1227 = vmax.xlane.f32.xlu0 %v1226
        %v1228 = vpop.xlane.xlu0 %1227
        %v1229 = vsel %vm1207, %v1204, -inf
        %1230 = vmax.xlane.f32.xlu0 %v1229
        %v1231 = vpop.xlane.xlu0 %1230
        %v1232 = vsub.f32 %v1060, %v1210
        %v1233 = vsub.f32 %v1063, %v1213
        %v1234 = vsub.f32 %v1107, %v1216
        %v1235 = vsub.f32 %v1110, %v1219
        %v1236 = vsub.f32 %v1154, %v1222
        %v1237 = vsub.f32 %v1157, %v1225
        %v1238 = vsub.f32 %v1201, %v1228
        %v1239 = vsub.f32 %v1204, %v1231
        %v1240 = vmul.f32 %v1232, 1.442695
        %v1241 = vpow.pop %v1240
        %v1242 = vmul.f32 %v1233, 1.442695
        %v1243 = vpow.pop %v1242
        %v1244 = vmul.f32 %v1234, 1.442695
        %v1245 = vpow.pop %v1244
        %v1246 = vmul.f32 %v1235, 1.442695
        %v1247 = vpow.pop %v1246
        %v1248 = vmul.f32 %v1236, 1.442695
        %v1249 = vpow.pop %v1248
        %v1250 = vmul.f32 %v1237, 1.442695
        %v1251 = vpow.pop %v1250
        %v1252 = vmul.f32 %v1238, 1.442695
        %v1253 = vpow.pop %v1252
        %v1254 = vmul.f32 %v1239, 1.442695
        %v1255 = vpow.pop %v1254
        %v1256 = vsel %vm1207, %v1241, 0.0
        %1257 = vadd.xlane.f32.xlu0 %v1256
        %v1258 = vpop.xlane.xlu0 %1257
        %v1259 = vsel %vm1207, %v1243, 0.0
        %1260 = vadd.xlane.f32.xlu0 %v1259
        %v1261 = vpop.xlane.xlu0 %1260
        %v1262 = vsel %vm1207, %v1245, 0.0
        %1263 = vadd.xlane.f32.xlu0 %v1262
        %v1264 = vpop.xlane.xlu0 %1263
        %v1265 = vsel %vm1207, %v1247, 0.0
        %1266 = vadd.xlane.f32.xlu0 %v1265
        %v1267 = vpop.xlane.xlu0 %1266
        %v1268 = vsel %vm1207, %v1249, 0.0
        %1269 = vadd.xlane.f32.xlu0 %v1268
        %v1270 = vpop.xlane.xlu0 %1269
        %v1271 = vsel %vm1207, %v1251, 0.0
        %1272 = vadd.xlane.f32.xlu0 %v1271
        %v1273 = vpop.xlane.xlu0 %1272
        %v1274 = vsel %vm1207, %v1253, 0.0
        %1275 = vadd.xlane.f32.xlu0 %v1274
        %v1276 = vpop.xlane.xlu0 %1275
        %v1277 = vsel %vm1207, %v1255, 0.0
        %1278 = vadd.xlane.f32.xlu0 %v1277
        %v1279 = vpop.xlane.xlu0 %1278
        %v1280 = vrcp.pop %v1258
        %v1281 = vrcp.pop %v1261
        %v1282 = vrcp.pop %v1264
        %v1283 = vrcp.pop %v1267
        %v1284 = vrcp.pop %v1270
        %v1285 = vrcp.pop %v1273
        %v1286 = vrcp.pop %v1276
        %v1287 = vrcp.pop %v1279
        %v1288 = vmul.f32 %v1241, %v1280
        %v1289 = vmul.f32 %v1243, %v1281
        %v1290 = vmul.f32 %v1245, %v1282
        %v1291 = vmul.f32 %v1247, %v1283
        %v1292 = vmul.f32 %v1249, %v1284
        %v1293 = vmul.f32 %v1251, %v1285
        %v1294 = vmul.f32 %v1253, %v1286
        %v1295 = vmul.f32 %v1255, %v1287
        %v1296 = vpack.c.bf16 %v1289, %v1288
        %v1297 = vpack.c.bf16 %v1291, %v1290
        %v1298 = vpack.c.bf16 %v1293, %v1292
        %v1299 = vpack.c.bf16 %v1295, %v1294
        %v1301 = vsel %vm1207, %v1296, 0
        %1303 = vmatprep.subr.bf16.mxu0 0
        %1304 = vmatpush1.bf16.msra.mxu0 %v1014
        %1305 = vmatprep.subr.bf16.mxu0 0
        %1306 = vmatpush1.bf16.msra.mxu0 0
        %1307 = vmatprep.subr.bf16.mxu0 0
        %1308 = vmatpush1.bf16.msra.mxu0 0
        %1309 = vmatprep.subr.bf16.mxu0 0
        %1310 = vmatpush1.bf16.msra.mxu0 0
        %1311 = vmatprep.subr.bf16.mxu0 0
        %1312 = vmatpush1.bf16.msra.mxu0 0
        %1313 = vmatprep.subr.bf16.mxu0 0
        %1314 = vmatpush1.bf16.msra.mxu0 0
        %1315 = vmatprep.subr.bf16.mxu0 0
        %1316 = vmatpush1.bf16.msra.mxu0 0
        %1317 = vmatprep.subr.bf16.mxu0 0
        %1318 = vmatpush1.bf16.msra.mxu0 0
        %1319 = vmatprep.subr.bf16.mxu0 0
        %1320 = vmatpush1.bf16.msra.mxu0 0
        %1321 = vmatprep.subr.bf16.mxu0 0
        %1322 = vmatpush1.bf16.msra.mxu0 0
        %1323 = vmatprep.subr.bf16.mxu0 0
        %1324 = vmatpush1.bf16.msra.mxu0 0
        %1325 = vmatprep.subr.bf16.mxu0 0
        %1326 = vmatpush1.bf16.msra.mxu0 0
        %1327 = vmatprep.subr.bf16.mxu0 0
        %1328 = vmatpush1.bf16.msra.mxu0 0
        %1329 = vmatprep.subr.bf16.mxu0 0
        %1330 = vmatpush1.bf16.msra.mxu0 0
        %1331 = vmatprep.subr.bf16.mxu0 0
        %1332 = vmatpush1.bf16.msra.mxu0 0
        %1333 = vmatprep.subr.bf16.mxu0 0
        %1334 = vmatpush1.bf16.msra.mxu0 0
        %1335 = vmatprep.mubr.bf16.mxu0 0
        %1336 = vmatmul.mubr.bf16.gmra.mrb[0].mxu0 %v1301
        %v1337 = vpop.f32.mrb[0].mxu0
        %v1338 = vadd.f32 0.0, %v1337
        %v1339 = vpop.f32.mrb[0].mxu0
        %v1340 = vpop.f32.mrb[0].mxu0
        %v1341 = vadd.f32 0.0, %v1340
        %v1342 = vpop.f32.mrb[0].mxu0
        %1343 = vdwg.mxu0
        %v1345 = vsel %vm1207, %v1297, 0
        %1347 = vmatprep.subr.bf16.mxu0 0
        %1348 = vmatpush1.bf16.msra.mxu0 %v1015
        %1349 = vmatprep.subr.bf16.mxu0 0
        %1350 = vmatpush1.bf16.msra.mxu0 0
        %1351 = vmatprep.subr.bf16.mxu0 0
        %1352 = vmatpush1.bf16.msra.mxu0 0
        %1353 = vmatprep.subr.bf16.mxu0 0
        %1354 = vmatpush1.bf16.msra.mxu0 0
        %1355 = vmatprep.subr.bf16.mxu0 0
        %1356 = vmatpush1.bf16.msra.mxu0 0
        %1357 = vmatprep.subr.bf16.mxu0 0
        %1358 = vmatpush1.bf16.msra.mxu0 0
        %1359 = vmatprep.subr.bf16.mxu0 0
        %1360 = vmatpush1.bf16.msra.mxu0 0
        %1361 = vmatprep.subr.bf16.mxu0 0
        %1362 = vmatpush1.bf16.msra.mxu0 0
        %1363 = vmatprep.subr.bf16.mxu0 0
        %1364 = vmatpush1.bf16.msra.mxu0 0
        %1365 = vmatprep.subr.bf16.mxu0 0
        %1366 = vmatpush1.bf16.msra.mxu0 0
        %1367 = vmatprep.subr.bf16.mxu0 0
        %1368 = vmatpush1.bf16.msra.mxu0 0
        %1369 = vmatprep.subr.bf16.mxu0 0
        %1370 = vmatpush1.bf16.msra.mxu0 0
        %1371 = vmatprep.subr.bf16.mxu0 0
        %1372 = vmatpush1.bf16.msra.mxu0 0
        %1373 = vmatprep.subr.bf16.mxu0 0
        %1374 = vmatpush1.bf16.msra.mxu0 0
        %1375 = vmatprep.subr.bf16.mxu0 0
        %1376 = vmatpush1.bf16.msra.mxu0 0
        %1377 = vmatprep.subr.bf16.mxu0 0
        %1378 = vmatpush1.bf16.msra.mxu0 0
        %1379 = vmatprep.mubr.bf16.mxu0 0
        %1380 = vmatmul.mubr.bf16.gmra.mrb[0].mxu0 %v1345
        %v1381 = vpop.f32.mrb[0].mxu0
        %v1382 = vadd.f32 0.0, %v1381
        %v1383 = vpop.f32.mrb[0].mxu0
        %v1384 = vpop.f32.mrb[0].mxu0
        %v1385 = vadd.f32 0.0, %v1384
        %v1386 = vpop.f32.mrb[0].mxu0
        %1387 = vdwg.mxu0
        %v1389 = vsel %vm1207, %v1298, 0
        %1391 = vmatprep.subr.bf16.mxu0 0
        %1392 = vmatpush1.bf16.msra.mxu0 %v1016
        %1393 = vmatprep.subr.bf16.mxu0 0
        %1394 = vmatpush1.bf16.msra.mxu0 0
        %1395 = vmatprep.subr.bf16.mxu0 0
        %1396 = vmatpush1.bf16.msra.mxu0 0
        %1397 = vmatprep.subr.bf16.mxu0 0
        %1398 = vmatpush1.bf16.msra.mxu0 0
        %1399 = vmatprep.subr.bf16.mxu0 0
        %1400 = vmatpush1.bf16.msra.mxu0 0
        %1401 = vmatprep.subr.bf16.mxu0 0
        %1402 = vmatpush1.bf16.msra.mxu0 0
        %1403 = vmatprep.subr.bf16.mxu0 0
        %1404 = vmatpush1.bf16.msra.mxu0 0
        %1405 = vmatprep.subr.bf16.mxu0 0
        %1406 = vmatpush1.bf16.msra.mxu0 0
        %1407 = vmatprep.subr.bf16.mxu0 0
        %1408 = vmatpush1.bf16.msra.mxu0 0
        %1409 = vmatprep.subr.bf16.mxu0 0
        %1410 = vmatpush1.bf16.msra.mxu0 0
        %1411 = vmatprep.subr.bf16.mxu0 0
        %1412 = vmatpush1.bf16.msra.mxu0 0
        %1413 = vmatprep.subr.bf16.mxu0 0
        %1414 = vmatpush1.bf16.msra.mxu0 0
        %1415 = vmatprep.subr.bf16.mxu0 0
        %1416 = vmatpush1.bf16.msra.mxu0 0
        %1417 = vmatprep.subr.bf16.mxu0 0
        %1418 = vmatpush1.bf16.msra.mxu0 0
        %1419 = vmatprep.subr.bf16.mxu0 0
        %1420 = vmatpush1.bf16.msra.mxu0 0
        %1421 = vmatprep.subr.bf16.mxu0 0
        %1422 = vmatpush1.bf16.msra.mxu0 0
        %1423 = vmatprep.mubr.bf16.mxu0 0
        %1424 = vmatmul.mubr.bf16.gmra.mrb[0].mxu0 %v1389
        %v1425 = vpop.f32.mrb[0].mxu0
        %v1426 = vadd.f32 0.0, %v1425
        %v1427 = vpop.f32.mrb[0].mxu0
        %v1428 = vpop.f32.mrb[0].mxu0
        %v1429 = vadd.f32 0.0, %v1428
        %v1430 = vpop.f32.mrb[0].mxu0
        %1431 = vdwg.mxu0
        %v1433 = vsel %vm1207, %v1299, 0
        %1435 = vmatprep.subr.bf16.mxu0 0
        %1436 = vmatpush1.bf16.msra.mxu0 %v1017
        %1437 = vmatprep.subr.bf16.mxu0 0
        %1438 = vmatpush1.bf16.msra.mxu0 0
        %1439 = vmatprep.subr.bf16.mxu0 0
        %1440 = vmatpush1.bf16.msra.mxu0 0
        %1441 = vmatprep.subr.bf16.mxu0 0
        %1442 = vmatpush1.bf16.msra.mxu0 0
        %1443 = vmatprep.subr.bf16.mxu0 0
        %1444 = vmatpush1.bf16.msra.mxu0 0
        %1445 = vmatprep.subr.bf16.mxu0 0
        %1446 = vmatpush1.bf16.msra.mxu0 0
        %1447 = vmatprep.subr.bf16.mxu0 0
        %1448 = vmatpush1.bf16.msra.mxu0 0
        %1449 = vmatprep.subr.bf16.mxu0 0
        %1450 = vmatpush1.bf16.msra.mxu0 0
        %1451 = vmatprep.subr.bf16.mxu0 0
        %1452 = vmatpush1.bf16.msra.mxu0 0
        %1453 = vmatprep.subr.bf16.mxu0 0
        %1454 = vmatpush1.bf16.msra.mxu0 0
        %1455 = vmatprep.subr.bf16.mxu0 0
        %1456 = vmatpush1.bf16.msra.mxu0 0
        %1457 = vmatprep.subr.bf16.mxu0 0
        %1458 = vmatpush1.bf16.msra.mxu0 0
        %1459 = vmatprep.subr.bf16.mxu0 0
        %1460 = vmatpush1.bf16.msra.mxu0 0
        %1461 = vmatprep.subr.bf16.mxu0 0
        %1462 = vmatpush1.bf16.msra.mxu0 0
        %1463 = vmatprep.subr.bf16.mxu0 0
        %1464 = vmatpush1.bf16.msra.mxu0 0
        %1465 = vmatprep.subr.bf16.mxu0 0
        %1466 = vmatpush1.bf16.msra.mxu0 0
        %1467 = vmatprep.mubr.bf16.mxu0 0
        %1468 = vmatmul.mubr.bf16.gmra.mrb[0].mxu0 %v1433
        %v1469 = vpop.f32.mrb[0].mxu0
        %v1470 = vadd.f32 0.0, %v1469
        %v1471 = vpop.f32.mrb[0].mxu0
        %v1472 = vpop.f32.mrb[0].mxu0
        %v1473 = vadd.f32 0.0, %v1472
        %v1474 = vpop.f32.mrb[0].mxu0
        %1475 = vdwg.mxu0
        %1478 = vrot.lane.b32.xlu0 %v1382, 32
        %v1479 = vpop.permute.xlu0 %1478
        %1480 = vrot.lane.b32.xlu0 %v1385, 32
        %v1481 = vpop.permute.xlu0 %1480
        %1486 = vrot.lane.b32.xlu0 %v1426, 64
        %v1487 = vpop.permute.xlu0 %1486
        %1488 = vrot.lane.b32.xlu0 %v1429, 64
        %v1489 = vpop.permute.xlu0 %1488
        %1494 = vrot.lane.b32.xlu0 %v1470, 96
        %v1495 = vpop.permute.xlu0 %1494
        %1496 = vrot.lane.b32.xlu0 %v1473, 96
        %v1497 = vpop.permute.xlu0 %1496
        %v1500 = vsel %vm1018, %v1338, %v1479
        %v1501 = vsel %vm1018, %v1341, %v1481
        %vm1502 = vcmask 523264
        %v1503 = vsel %vm1502, %v1500, %v1487
        %v1504 = vsel %vm1502, %v1501, %v1489
        %vm1505 = vcmask 785408
        %v1506 = vsel %vm1505, %v1503, %v1495
        %v1507 = vsel %vm1505, %v1504, %v1497
        %v1508 = vpack.c.bf16 %v1507, %v1506
        %v1509 = vld [vmem:[#allocation7] sm:$0xf]
        %v1510 = vld [vmem:[#allocation7 + $0x4] sm:$0xf]
        %v1511 = vld [vmem:[#allocation7 + $0x8] sm:$0xf]
        %v1512 = vld [vmem:[#allocation7 + $0xc] sm:$0xf]
        %v1513 = vld [vmem:[#allocation7 + $0x10] sm:$0xf]
        %v1514 = vld [vmem:[#allocation7 + $0x14] sm:$0xf]
        %v1515 = vld [vmem:[#allocation7 + $0x18] sm:$0xf]
        %v1516 = vld [vmem:[#allocation7 + $0x1c] sm:$0xf]
        %v1517 = vld [vmem:[#allocation7 + $0x20] sm:$0xf]
        %v1518 = vld [vmem:[#allocation7 + $0x24] sm:$0xf]
        %v1519 = vld [vmem:[#allocation7 + $0x28] sm:$0xf]
        %v1520 = vld [vmem:[#allocation7 + $0x2c] sm:$0xf]
        %v1521 = vld [vmem:[#allocation7 + $0x30] sm:$0xf]
        %v1522 = vld [vmem:[#allocation7 + $0x34] sm:$0xf]
        %v1523 = vld [vmem:[#allocation7 + $0x38] sm:$0xf]
        %v1524 = vld [vmem:[#allocation7 + $0x3c] sm:$0xf]
        %v1525 = vld [vmem:[%s8] sm:$0x1]
        %v1527 = vlaneseq
        %v1528 = vshrl.u32 %v1527, 7
        %v1529 = vsub.s32 0, %v1528
        %v1530 = vrot.slane %v1525, %v1529
        %v1548 = vunpack.c.l.b16 %v1509
        %v1549 = vunpack.c.l.b16 %v1510
        %v1550 = vunpack.c.l.b16 %v1511
        %v1551 = vunpack.c.l.b16 %v1512
        %v1552 = vunpack.c.l.b16 %v1513
        %v1553 = vunpack.c.l.b16 %v1514
        %v1554 = vunpack.c.l.b16 %v1515
        %v1555 = vunpack.c.l.b16 %v1516
        %v1556 = vunpack.c.l.b16 %v1517
        %v1557 = vunpack.c.l.b16 %v1518
        %v1558 = vunpack.c.l.b16 %v1519
        %v1559 = vunpack.c.l.b16 %v1520
        %v1560 = vunpack.c.l.b16 %v1521
        %v1561 = vunpack.c.l.b16 %v1522
        %v1562 = vunpack.c.l.b16 %v1523
        %v1563 = vunpack.c.l.b16 %v1524
        %v1564 = vpack.c.b16 %v1549, %v1548
        %v1565 = vpack.c.b16 %v1551, %v1550
        %v1566 = vpack.c.b16 %v1553, %v1552
        %v1567 = vpack.c.b16 %v1555, %v1554
        %v1568 = vpack.c.b16 %v1557, %v1556
        %v1569 = vpack.c.b16 %v1559, %v1558
        %v1570 = vpack.c.b16 %v1561, %v1560
        %v1571 = vpack.c.b16 %v1563, %v1562
        %1580 = vmatprep.subr.bf16.mxu0 0
        %1581 = vmatpush1.bf16.msra.mxu0 %v1564
        %1582 = vmatprep.subr.bf16.mxu0 0
        %1583 = vmatpush1.bf16.msra.mxu0 %v1565
        %1584 = vmatprep.subr.bf16.mxu0 0
        %1585 = vmatpush1.bf16.msra.mxu0 %v1566
        %1586 = vmatprep.subr.bf16.mxu0 0
        %1587 = vmatpush1.bf16.msra.mxu0 %v1567
        %1588 = vmatprep.subr.bf16.mxu0 0
        %1589 = vmatpush1.bf16.msra.mxu0 %v1568
        %1590 = vmatprep.subr.bf16.mxu0 0
        %1591 = vmatpush1.bf16.msra.mxu0 %v1569
        %1592 = vmatprep.subr.bf16.mxu0 0
        %1593 = vmatpush1.bf16.msra.mxu0 %v1570
        %1594 = vmatprep.subr.bf16.mxu0 0
        %1595 = vmatpush1.bf16.msra.mxu0 %v1571
        %1596 = vmatprep.subr.bf16.mxu0 0
        %1597 = vmatpush1.bf16.msra.mxu0 0
        %1598 = vmatprep.subr.bf16.mxu0 0
        %1599 = vmatpush1.bf16.msra.mxu0 0
        %1600 = vmatprep.subr.bf16.mxu0 0
        %1601 = vmatpush1.bf16.msra.mxu0 0
        %1602 = vmatprep.subr.bf16.mxu0 0
        %1603 = vmatpush1.bf16.msra.mxu0 0
        %1604 = vmatprep.subr.bf16.mxu0 0
        %1605 = vmatpush1.bf16.msra.mxu0 0
        %1606 = vmatprep.subr.bf16.mxu0 0
        %1607 = vmatpush1.bf16.msra.mxu0 0
        %1608 = vmatprep.subr.bf16.mxu0 0
        %1609 = vmatpush1.bf16.msra.mxu0 0
        %1610 = vmatprep.subr.bf16.mxu0 0
        %1611 = vmatpush1.bf16.msra.mxu0 0
        %1612 = vmatprep.mubr.bf16.mxu0 0
        %1613 = vmatmul.mubr.bf16.gmra.mrb[0].mxu0 %v1508
        %v1614 = vpop.f32.mrb[0].mxu0
        %v1615 = vadd.f32 %v1530, %v1614
        %v1616 = vpop.f32.mrb[0].mxu0
        %v1617 = vpop.f32.mrb[0].mxu0
        %v1618 = vadd.f32 %v1530, %v1617
        %v1619 = vpop.f32.mrb[0].mxu0
        %1620 = vdwg.mxu0
        %v1621 = vld [vmem:[%s9] sm:$0x1]
        %v1622 = vmul.f32 %v1615, %v1615
        %v1623 = vmul.f32 %v1618, %v1618
        %1624 = vadd.xlane.f32.xlu0 %v1622
        %v1625 = vpop.xlane.xlu0 %1624
        %1626 = vadd.xlane.f32.xlu0 %v1623
        %v1627 = vpop.xlane.xlu0 %1626
        %v1628 = vmax.f32 %v1625, 1e-24
        %v1629 = vmax.f32 %v1627, 1e-24
        %v1630 = vrsqrt.pop %v1628
        %v1631 = vrsqrt.pop %v1629
        %v1632 = vmul.f32 %v1615, %v1630
        %v1633 = vmul.f32 %v1618, %v1631
        %v1635 = vlaneseq
        %v1636 = vshrl.u32 %v1635, 7
        %v1637 = vsub.s32 0, %v1636
        %v1638 = vrot.slane %v1621, %v1637
        %v1640 = vmul.f32 %v1632, %v1638
        %v1641 = vmul.f32 %v1633, %v1638
        %v1642 = vadd.f32 %v599, %v1640
        %v1643 = vadd.f32 %v600, %v1641
        %v1644 = vld [vmem:[%s10] sm:$0x1]
        %v1645 = vld [vmem:[%s11] sm:$0x1]
        %1646 = vadd.xlane.f32.xlu0 %v1642
        %v1647 = vpop.xlane.xlu0 %1646
        %1648 = vadd.xlane.f32.xlu0 %v1643
        %v1649 = vpop.xlane.xlu0 %1648
        %v1650 = vmul.f32 %v1647, %v607
        %v1651 = vmul.f32 %v1649, %v607
        %v1652 = vsub.f32 %v1642, %v1650
        %v1653 = vsub.f32 %v1643, %v1651
        %v1654 = vmul.f32 %v1652, %v1652
        %v1655 = vmul.f32 %v1653, %v1653
        %1656 = vadd.xlane.f32.xlu0 %v1654
        %v1657 = vpop.xlane.xlu0 %1656
        %1658 = vadd.xlane.f32.xlu0 %v1655
        %v1659 = vpop.xlane.xlu0 %1658
        %v1660 = vmul.f32 %v1657, %v607
        %v1661 = vmul.f32 %v1659, %v607
        %v1662 = vadd.f32 %v1660, 1e-06
        %v1663 = vadd.f32 %v1661, 1e-06
        %v1664 = vrsqrt.pop %v1662
        %v1665 = vrsqrt.pop %v1663
        %v1666 = vmul.f32 %v1652, %v1664
        %v1667 = vmul.f32 %v1653, %v1665
        %v1669 = vlaneseq
        %v1670 = vshrl.u32 %v1669, 7
        %v1671 = vsub.s32 0, %v1670
        %v1672 = vrot.slane %v1644, %v1671
        %v1674 = vmul.f32 %v1666, %v1672
        %v1675 = vmul.f32 %v1667, %v1672
        %v1677 = vlaneseq
        %v1678 = vshrl.u32 %v1677, 7
        %v1679 = vsub.s32 0, %v1678
        %v1680 = vrot.slane %v1645, %v1679
        %v1682 = vadd.f32 %v1674, %v1680
        %v1683 = vadd.f32 %v1675, %v1680
        %v1684 = vpack.c.bf16 %v1683, %v1682
        %v1685 = vld [vmem:[#allocation8] sm:$0xff]
        %v1686 = vld [vmem:[#allocation8 + $0x8] sm:$0xff]
        %v1687 = vld [vmem:[#allocation8 + $0x10] sm:$0xff]
        %v1688 = vld [vmem:[#allocation8 + $0x18] sm:$0xff]
        %v1689 = vld [vmem:[#allocation8 + $0x20] sm:$0xff]
        %v1690 = vld [vmem:[#allocation8 + $0x28] sm:$0xff]
        %v1691 = vld [vmem:[#allocation8 + $0x30] sm:$0xff]
        %v1692 = vld [vmem:[#allocation8 + $0x38] sm:$0xff]
        %v1693 = vld [vmem:[#allocation8 + $0x40] sm:$0xff]
        %v1694 = vld [vmem:[#allocation8 + $0x48] sm:$0xff]
        %v1695 = vld [vmem:[#allocation8 + $0x50] sm:$0xff]
        %v1696 = vld [vmem:[#allocation8 + $0x58] sm:$0xff]
        %v1697 = vld [vmem:[#allocation8 + $0x60] sm:$0xff]
        %v1698 = vld [vmem:[#allocation8 + $0x68] sm:$0xff]
        %v1699 = vld [vmem:[#allocation8 + $0x70] sm:$0xff]
        %v1700 = vld [vmem:[#allocation8 + $0x78] sm:$0xff]
        %v1701 = vld [vmem:[%s13] sm:$0x3]
        %v1703 = vlaneseq
        %v1704 = vshrl.u32 %v1703, 7
        %v1705 = vsub.s32 0, %v1704
        %v1706 = vrot.slane %v1701, %v1705
        %v1707 = vlaneseq
        %v1708 = vshrl.u32 %v1707, 7
        %v1709 = vsub.s32 1, %v1708
        %v1710 = vrot.slane %v1701, %v1709
        %v1729 = vunpack.c.l.b16 %v1685
        %v1730 = vunpack.c.h.b16 %v1685
        %v1731 = vunpack.c.l.b16 %v1686
        %v1732 = vunpack.c.h.b16 %v1686
        %v1733 = vunpack.c.l.b16 %v1687
        %v1734 = vunpack.c.h.b16 %v1687
        %v1735 = vunpack.c.l.b16 %v1688
        %v1736 = vunpack.c.h.b16 %v1688
        %v1737 = vunpack.c.l.b16 %v1689
        %v1738 = vunpack.c.h.b16 %v1689
        %v1739 = vunpack.c.l.b16 %v1690
        %v1740 = vunpack.c.h.b16 %v1690
        %v1741 = vunpack.c.l.b16 %v1691
        %v1742 = vunpack.c.h.b16 %v1691
        %v1743 = vunpack.c.l.b16 %v1692
        %v1744 = vunpack.c.h.b16 %v1692
        %v1745 = vunpack.c.l.b16 %v1693
        %v1746 = vunpack.c.h.b16 %v1693
        %v1747 = vunpack.c.l.b16 %v1694
        %v1748 = vunpack.c.h.b16 %v1694
        %v1749 = vunpack.c.l.b16 %v1695
        %v1750 = vunpack.c.h.b16 %v1695
        %v1751 = vunpack.c.l.b16 %v1696
        %v1752 = vunpack.c.h.b16 %v1696
        %v1753 = vunpack.c.l.b16 %v1697
        %v1754 = vunpack.c.h.b16 %v1697
        %v1755 = vunpack.c.l.b16 %v1698
        %v1756 = vunpack.c.h.b16 %v1698
        %v1757 = vunpack.c.l.b16 %v1699
        %v1758 = vunpack.c.h.b16 %v1699
        %v1759 = vunpack.c.l.b16 %v1700
        %v1760 = vunpack.c.h.b16 %v1700
        %v1761 = vpack.c.b16 %v1731, %v1729
        %v1762 = vpack.c.b16 %v1732, %v1730
        %v1763 = vpack.c.b16 %v1735, %v1733
        %v1764 = vpack.c.b16 %v1736, %v1734
        %v1765 = vpack.c.b16 %v1739, %v1737
        %v1766 = vpack.c.b16 %v1740, %v1738
        %v1767 = vpack.c.b16 %v1743, %v1741
        %v1768 = vpack.c.b16 %v1744, %v1742
        %v1769 = vpack.c.b16 %v1747, %v1745
        %v1770 = vpack.c.b16 %v1748, %v1746
        %v1771 = vpack.c.b16 %v1751, %v1749
        %v1772 = vpack.c.b16 %v1752, %v1750
        %v1773 = vpack.c.b16 %v1755, %v1753
        %v1774 = vpack.c.b16 %v1756, %v1754
        %v1775 = vpack.c.b16 %v1759, %v1757
        %v1776 = vpack.c.b16 %v1760, %v1758
        %1793 = vmatprep.subr.bf16.mxu0 %v1762
        %1794 = vmatpush1.bf16.msra.mxu0 %v1761
        %1795 = vmatprep.subr.bf16.mxu0 %v1764
        %1796 = vmatpush1.bf16.msra.mxu0 %v1763
        %1797 = vmatprep.subr.bf16.mxu0 %v1766
        %1798 = vmatpush1.bf16.msra.mxu0 %v1765
        %1799 = vmatprep.subr.bf16.mxu0 %v1768
        %1800 = vmatpush1.bf16.msra.mxu0 %v1767
        %1801 = vmatprep.subr.bf16.mxu0 %v1770
        %1802 = vmatpush1.bf16.msra.mxu0 %v1769
        %1803 = vmatprep.subr.bf16.mxu0 %v1772
        %1804 = vmatpush1.bf16.msra.mxu0 %v1771
        %1805 = vmatprep.subr.bf16.mxu0 %v1774
        %1806 = vmatpush1.bf16.msra.mxu0 %v1773
        %1807 = vmatprep.subr.bf16.mxu0 %v1776
        %1808 = vmatpush1.bf16.msra.mxu0 %v1775
        %1809 = vmatprep.subr.bf16.mxu0 0
        %1810 = vmatpush1.bf16.msra.mxu0 0
        %1811 = vmatprep.subr.bf16.mxu0 0
        %1812 = vmatpush1.bf16.msra.mxu0 0
        %1813 = vmatprep.subr.bf16.mxu0 0
        %1814 = vmatpush1.bf16.msra.mxu0 0
        %1815 = vmatprep.subr.bf16.mxu0 0
        %1816 = vmatpush1.bf16.msra.mxu0 0
        %1817 = vmatprep.subr.bf16.mxu0 0
        %1818 = vmatpush1.bf16.msra.mxu0 0
        %1819 = vmatprep.subr.bf16.mxu0 0
        %1820 = vmatpush1.bf16.msra.mxu0 0
        %1821 = vmatprep.subr.bf16.mxu0 0
        %1822 = vmatpush1.bf16.msra.mxu0 0
        %1823 = vmatprep.subr.bf16.mxu0 0
        %1824 = vmatpush1.bf16.msra.mxu0 0
        %1825 = vmatprep.mubr.bf16.mxu0 0
        %1826 = vmatmul.mubr.bf16.gmra.mrb[0].mxu0 %v1684
        %v1827 = vpop.f32.mrb[0].mxu0
        %v1828 = vadd.f32 %v1706, %v1827
        %v1829 = vpop.f32.mrb[0].mxu0
        %v1830 = vadd.f32 %v1710, %v1829
        %v1831 = vpop.f32.mrb[0].mxu0
        %v1832 = vadd.f32 %v1706, %v1831
        %v1833 = vpop.f32.mrb[0].mxu0
        %v1834 = vadd.f32 %v1710, %v1833
        %1835 = vdwg.mxu0
        %v1836 = vxor.u32 %v1828, 2147483648
        %v1837 = vxor.u32 %v1830, 2147483648
        %v1838 = vxor.u32 %v1832, 2147483648
        %v1839 = vxor.u32 %v1834, 2147483648
        %v1840 = vmul.f32 %v1836, 1.442695
        %v1841 = vpow.pop %v1840
        %v1842 = vmul.f32 %v1837, 1.442695
        %v1843 = vpow.pop %v1842
        %v1844 = vmul.f32 %v1838, 1.442695
        %v1845 = vpow.pop %v1844
        %v1846 = vmul.f32 %v1839, 1.442695
        %v1847 = vpow.pop %v1846
        %v1848 = vadd.f32 %v1841, 1.0
        %v1849 = vadd.f32 %v1843, 1.0
        %v1850 = vadd.f32 %v1845, 1.0
        %v1851 = vadd.f32 %v1847, 1.0
        %v1852 = vrcp.pop %v1848
        %v1853 = vmul.f32 1.0, %v1852
        %v1854 = vrcp.pop %v1849
        %v1855 = vmul.f32 1.0, %v1854
        %v1856 = vrcp.pop %v1850
        %v1857 = vmul.f32 1.0, %v1856
        %v1858 = vrcp.pop %v1851
        %v1859 = vmul.f32 1.0, %v1858
        %v1860 = vmul.f32 %v1828, %v1853
        %v1861 = vmul.f32 %v1830, %v1855
        %v1862 = vmul.f32 %v1832, %v1857
        %v1863 = vmul.f32 %v1834, %v1859
        %v1864 = vpack.c.bf16 %v1862, %v1860
        %v1865 = vpack.c.bf16 %v1863, %v1861
        %v1866 = vld [vmem:[#allocation10] sm:$0xf]
        %v1867 = vld [vmem:[#allocation10 + $0x4] sm:$0xf]
        %v1868 = vld [vmem:[#allocation10 + $0x8] sm:$0xf]
        %v1869 = vld [vmem:[#allocation10 + $0xc] sm:$0xf]
        %v1870 = vld [vmem:[#allocation10 + $0x10] sm:$0xf]
        %v1871 = vld [vmem:[#allocation10 + $0x14] sm:$0xf]
        %v1872 = vld [vmem:[#allocation10 + $0x18] sm:$0xf]
        %v1873 = vld [vmem:[#allocation10 + $0x1c] sm:$0xf]
        %v1874 = vld [vmem:[#allocation10 + $0x20] sm:$0xf]
        %v1875 = vld [vmem:[#allocation10 + $0x24] sm:$0xf]
        %v1876 = vld [vmem:[#allocation10 + $0x28] sm:$0xf]
        %v1877 = vld [vmem:[#allocation10 + $0x2c] sm:$0xf]
        %v1878 = vld [vmem:[#allocation10 + $0x30] sm:$0xf]
        %v1879 = vld [vmem:[#allocation10 + $0x34] sm:$0xf]
        %v1880 = vld [vmem:[#allocation10 + $0x38] sm:$0xf]
        %v1881 = vld [vmem:[#allocation10 + $0x3c] sm:$0xf]
        %v1882 = vld [vmem:[#allocation10 + $0x40] sm:$0xf]
        %v1883 = vld [vmem:[#allocation10 + $0x44] sm:$0xf]
        %v1884 = vld [vmem:[#allocation10 + $0x48] sm:$0xf]
        %v1885 = vld [vmem:[#allocation10 + $0x4c] sm:$0xf]
        %v1886 = vld [vmem:[#allocation10 + $0x50] sm:$0xf]
        %v1887 = vld [vmem:[#allocation10 + $0x54] sm:$0xf]
        %v1888 = vld [vmem:[#allocation10 + $0x58] sm:$0xf]
        %v1889 = vld [vmem:[#allocation10 + $0x5c] sm:$0xf]
        %v1890 = vld [vmem:[#allocation10 + $0x60] sm:$0xf]
        %v1891 = vld [vmem:[#allocation10 + $0x64] sm:$0xf]
        %v1892 = vld [vmem:[#allocation10 + $0x68] sm:$0xf]
        %v1893 = vld [vmem:[#allocation10 + $0x6c] sm:$0xf]
        %v1894 = vld [vmem:[#allocation10 + $0x70] sm:$0xf]
        %v1895 = vld [vmem:[#allocation10 + $0x74] sm:$0xf]
        %v1896 = vld [vmem:[#allocation10 + $0x78] sm:$0xf]
        %v1897 = vld [vmem:[#allocation10 + $0x7c] sm:$0xf]
        %v1898 = vld [vmem:[%s15] sm:$0x1]
        %v1900 = vlaneseq
        %v1901 = vshrl.u32 %v1900, 7
        %v1902 = vsub.s32 0, %v1901
        %v1903 = vrot.slane %v1898, %v1902
        %v1937 = vunpack.c.l.b16 %v1866
        %v1938 = vunpack.c.l.b16 %v1867
        %v1939 = vunpack.c.l.b16 %v1868
        %v1940 = vunpack.c.l.b16 %v1869
        %v1941 = vunpack.c.l.b16 %v1870
        %v1942 = vunpack.c.l.b16 %v1871
        %v1943 = vunpack.c.l.b16 %v1872
        %v1944 = vunpack.c.l.b16 %v1873
        %v1945 = vunpack.c.l.b16 %v1874
        %v1946 = vunpack.c.l.b16 %v1875
        %v1947 = vunpack.c.l.b16 %v1876
        %v1948 = vunpack.c.l.b16 %v1877
        %v1949 = vunpack.c.l.b16 %v1878
        %v1950 = vunpack.c.l.b16 %v1879
        %v1951 = vunpack.c.l.b16 %v1880
        %v1952 = vunpack.c.l.b16 %v1881
        %v1953 = vunpack.c.l.b16 %v1882
        %v1954 = vunpack.c.l.b16 %v1883
        %v1955 = vunpack.c.l.b16 %v1884
        %v1956 = vunpack.c.l.b16 %v1885
        %v1957 = vunpack.c.l.b16 %v1886
        %v1958 = vunpack.c.l.b16 %v1887
        %v1959 = vunpack.c.l.b16 %v1888
        %v1960 = vunpack.c.l.b16 %v1889
        %v1961 = vunpack.c.l.b16 %v1890
        %v1962 = vunpack.c.l.b16 %v1891
        %v1963 = vunpack.c.l.b16 %v1892
        %v1964 = vunpack.c.l.b16 %v1893
        %v1965 = vunpack.c.l.b16 %v1894
        %v1966 = vunpack.c.l.b16 %v1895
        %v1967 = vunpack.c.l.b16 %v1896
        %v1968 = vunpack.c.l.b16 %v1897
        %v1969 = vpack.c.b16 %v1938, %v1937
        %v1970 = vpack.c.b16 %v1940, %v1939
        %v1971 = vpack.c.b16 %v1942, %v1941
        %v1972 = vpack.c.b16 %v1944, %v1943
        %v1973 = vpack.c.b16 %v1946, %v1945
        %v1974 = vpack.c.b16 %v1948, %v1947
        %v1975 = vpack.c.b16 %v1950, %v1949
        %v1976 = vpack.c.b16 %v1952, %v1951
        %v1977 = vpack.c.b16 %v1954, %v1953
        %v1978 = vpack.c.b16 %v1956, %v1955
        %v1979 = vpack.c.b16 %v1958, %v1957
        %v1980 = vpack.c.b16 %v1960, %v1959
        %v1981 = vpack.c.b16 %v1962, %v1961
        %v1982 = vpack.c.b16 %v1964, %v1963
        %v1983 = vpack.c.b16 %v1966, %v1965
        %v1984 = vpack.c.b16 %v1968, %v1967
        %2001 = vmatprep.subr.bf16.mxu0 0
        %2002 = vmatpush1.bf16.msra.mxu0 %v1969
        %2003 = vmatprep.subr.bf16.mxu0 0
        %2004 = vmatpush1.bf16.msra.mxu0 %v1970
        %2005 = vmatprep.subr.bf16.mxu0 0
        %2006 = vmatpush1.bf16.msra.mxu0 %v1971
        %2007 = vmatprep.subr.bf16.mxu0 0
        %2008 = vmatpush1.bf16.msra.mxu0 %v1972
        %2009 = vmatprep.subr.bf16.mxu0 0
        %2010 = vmatpush1.bf16.msra.mxu0 %v1973
        %2011 = vmatprep.subr.bf16.mxu0 0
        %2012 = vmatpush1.bf16.msra.mxu0 %v1974
        %2013 = vmatprep.subr.bf16.mxu0 0
        %2014 = vmatpush1.bf16.msra.mxu0 %v1975
        %2015 = vmatprep.subr.bf16.mxu0 0
        %2016 = vmatpush1.bf16.msra.mxu0 %v1976
        %2017 = vmatprep.subr.bf16.mxu0 0
        %2018 = vmatpush1.bf16.msra.mxu0 %v1977
        %2019 = vmatprep.subr.bf16.mxu0 0
        %2020 = vmatpush1.bf16.msra.mxu0 %v1978
        %2021 = vmatprep.subr.bf16.mxu0 0
        %2022 = vmatpush1.bf16.msra.mxu0 %v1979
        %2023 = vmatprep.subr.bf16.mxu0 0
        %2024 = vmatpush1.bf16.msra.mxu0 %v1980
        %2025 = vmatprep.subr.bf16.mxu0 0
        %2026 = vmatpush1.bf16.msra.mxu0 %v1981
        %2027 = vmatprep.subr.bf16.mxu0 0
        %2028 = vmatpush1.bf16.msra.mxu0 %v1982
        %2029 = vmatprep.subr.bf16.mxu0 0
        %2030 = vmatpush1.bf16.msra.mxu0 %v1983
        %2031 = vmatprep.subr.bf16.mxu0 0
        %2032 = vmatpush1.bf16.msra.mxu0 %v1984
        %2033 = vmatprep.mubr.bf16.mxu0 %v1865
        %2034 = vmatmul.mubr.bf16.gmra.mrb[0].mxu0 %v1864
        %v2035 = vpop.f32.mrb[0].mxu0
        %v2036 = vadd.f32 %v1903, %v2035
        %v2037 = vpop.f32.mrb[0].mxu0
        %v2038 = vpop.f32.mrb[0].mxu0
        %v2039 = vadd.f32 %v1903, %v2038
        %v2040 = vpop.f32.mrb[0].mxu0
        %2041 = vdwg.mxu0
        %v2042 = vadd.f32 %v1642, %v2036
        %v2043 = vadd.f32 %v1643, %v2039
        %2044 = vst [vmem:[%s597] sm:$0xff] %v2042
        %2045 = vst [vmem:[%s597 + $0x8] sm:$0xff] %v2043
        %s2046 = sand.u32 %s384, 1
        %s2047 = scalar_lea.sflag [#allocation4], %s2046
        %s2048 = sand.u32 %s384, 1
        %s2049 = smul.addr %s2048, 16
        %s2050 = scalar_lea.vmem [#allocation11], %s2049
        // Predicated region
        $region105: #{tpu_custom_call.1} parent=83 // pred_check
          %p2051 = pneg %p394
        $region106: #{tpu_custom_call.1} parent=83 // pred_check_branch
          %2053 = sbr.rel (%p2051) target = $region108
        $region107: #{tpu_custom_call.1} parent=83 // pred_region
          %s2055 = ssub.s32 256, 256
          %2056 = vsyncadd %s2047, %s2055
          %s2057 = smul.addr %s35, 2
          %s2058 = smul.addr %s2057, 128
          %s2059 = scalar_lea.hbm %s16, %s2058
          %s2060 = sshll.u32 %s2050, 4
          %s2061 = int_to_ptr.vmem [resolvable:$true] %s2060
          %2066 = dma.vmem_to_hbm [thread:$0]  %s2061, 256, %s2059, %s2047, 128, 128, 8
        $region108: #{tpu_custom_call.1} parent=83 // pred_fallthru
          _
      $region84: #{tpu_custom_call.1} parent=5 // pred_fallthru
        _
      %p2067 = scmp.le.s32.totalorder 2, %s30
      // Predicated region
      $region109: #{tpu_custom_call.1} parent=5 // pred_check
        %p2068 = pneg %p2067
      $region110: #{tpu_custom_call.1} parent=5 // pred_check_branch
        %2070 = sbr.rel (%p2068) target = $region112
      $region111: #{tpu_custom_call.1} parent=5 // pred_region
        %s2071 = ssub.s32 %s30, 2
        // Predicated region
        $region113: #{tpu_custom_call.1} parent=111 // pred_check
          %p2072 = pneg %p400
        $region114: #{tpu_custom_call.1} parent=111 // pred_check_branch
          %2074 = sbr.rel (%p2072) target = $region116
        $region115: #{tpu_custom_call.1} parent=111 // pred_region
          %s2075 = sand.u32 %s385, 1
          %s2076 = scalar_lea.sflag [#allocation4], %s2075
          %s2077 = sand.u32 %s385, 1
          %s2078 = smul.addr %s2077, 16
          %s2079 = scalar_lea.vmem [#allocation11], %s2078
          %2080 = dma.done %s2076, 256
        $region116: #{tpu_custom_call.1} parent=111 // pred_fallthru
          _
      $region112: #{tpu_custom_call.1} parent=5 // pred_fallthru
        _
    $region6: #{tpu_custom_call.1} parent=1 // loop_footer
      %s34 = sadd.s32 1, %s30
    $region7: #{tpu_custom_call.1} parent=1 // loop_footer_branch
      %29 = sbr.rel target = $region3
    $region8: #{tpu_custom_call.1} parent=1 // loop_exit
      _
    %2081 = vsyncpa [#allocation3], 1
    %s2082 = scalar_lea.sflag [#allocation3], 1
    %2083 = vsyncpa %s2082, 1
    %2084 = vsyncpa [#allocation6], 1
    %2085 = vsyncpa [#allocation9], 1
    %2086 = vsyncpa [#allocation4], 1
    %s2087 = scalar_lea.sflag [#allocation4], 1
    %2088 = vsyncpa %s2087, 1

</llo_original>
